<compile_context>
chip_gen: v5e
topology: v5e:2x2
jax: 0.10.0
libtpu: 0.0.40
codegen_flags: <defaults>
</compile_context>

<pallas_src>
import functools

import jax
import jax.numpy as jnp
from jax.experimental import pallas as pl
from jax.experimental.pallas import tpu as pltpu

ALPHA_TOPK = 0.1   # diff_top_k's default alpha (inside the sigmoid)
EPS = 1e-5         # InstanceNorm eps


def _soft_agg_net_kernel(k, num_layers, a_ref, x_ref, s1_ref, s2_ref, s3_ref,
                         out_ref):
    """Fused SoftAggNet forward.

    a_ref : (N, N)   symmetric normalized adjacency (f32)
    x_ref : (2, N)   lane-major input features; layer-0 uses row 0, row 1 is zero
    s1_ref: (L, 8, 9)   conv1 weights, (Cout, 4*2+1) per layer, bias in last col
    s2_ref: (L, 8, 33)  conv2 weights, (Cout, 4*8+1) per layer
    s3_ref: (L, 1, 33)  conv3 weights, (Cout, 4*8+1) per layer
    out_ref:(1, N)   soft top-k mask of the last layer (== SoftAggNet output)
    """
    A = a_ref[...]                                       # (N, N) f32, resident
    n = A.shape[1]
    ones_row = jnp.ones((1, n), jnp.float32)             # hoisted bias row

    def tag_conv(h, wt):
        # h: (Cin, N) lane-major; wt: (Cout, 4*Cin + 1), bias folded into last col.
        hops = [h]
        for _ in range(3):                               # K = 3 propagation hops
            hops.append(jnp.dot(hops[-1], A, preferred_element_type=jnp.float32))
        p = jnp.concatenate(hops + [ones_row], axis=0)   # (4*Cin + 1, N)
        return jnp.dot(wt, p, preferred_element_type=jnp.float32)  # (Cout, N)

    h = x_ref[...]                                       # (2, N)
    soft = None
    for layer in range(num_layers):                      # unrolled at trace time
        h1 = jnp.maximum(tag_conv(h, s1_ref[layer]), 0.0)    # (8, N)
        h2 = jnp.maximum(tag_conv(h1, s2_ref[layer]), 0.0)   # (8, N)
        h3 = jnp.maximum(tag_conv(h2, s3_ref[layer]), 0.0)   # (1, N)

        # InstanceNorm(1), affine=False: normalize over nodes (lane reduction).
        mean = jnp.mean(h3, axis=1, keepdims=True)
        var = jnp.mean((h3 - mean) ** 2, axis=1, keepdims=True)
        v = (h3 - mean) * jax.lax.rsqrt(var + EPS)           # (1, N)

        # diff_top_k: rank = #{j : v_j > v_i}; top set = rank < k;
        # k-th largest value = min over the top set (robust when ranks skip).
        vcol = jnp.transpose(v)                               # (N, 1)
        rank = jnp.sum((vcol > v).astype(jnp.float32),
                       axis=0, keepdims=True)                 # (1, N)
        in_top = rank < float(k)                              # (1, N)
        k_smallest = jnp.abs(
            jnp.min(jnp.where(in_top, v, jnp.inf), axis=1, keepdims=True))
        top_vec = jnp.where(in_top, 1.0, -1.0)                # (1, N)
        soft = jax.nn.sigmoid(v - k_smallest + top_vec * ALPHA_TOPK)  # (1, N)

        h = jnp.concatenate([v, soft], axis=0)                # (2, N) -> next layer

    out_ref[...] = soft                                       # lane-dense store


def _pack_conv(w, b, cin_pad):
    """Pack one TAGConv's (4, Cin, Cout) weights + (1, Cout) bias into a
    lane-major slab (Cout, 4*cin_pad + 1) matching the kernel's hop-major P."""
    k1, cin, cout = w.shape
    if cin < cin_pad:                       # layer-0 conv1: pad fake channel(s)
        w = jnp.pad(w, ((0, 0), (0, cin_pad - cin), (0, 0)))
    wt = jnp.transpose(w.reshape(k1 * cin_pad, cout))         # (Cout, 4*cin_pad)
    return jnp.concatenate([wt, jnp.transpose(b)], axis=1)    # bias as last col


def pack_params(all_params):
    s1, s2, s3 = [], [], []
    for (w1, b1, w2, b2, w3, b3) in all_params:
        s1.append(_pack_conv(w1, b1, 2))    # (8, 9)
        s2.append(_pack_conv(w2, b2, 8))    # (8, 33)
        s3.append(_pack_conv(w3, b3, 8))    # (1, 33)
    return jnp.stack(s1), jnp.stack(s2), jnp.stack(s3)


def soft_agg_net(a_norm, x, edge_attr, all_params, k):
    """SoftAggNet.forward: 4 fused SoftAggLayers; returns (x[:, 1], edge_attr)."""
    n = a_norm.shape[0]
    x = jnp.reshape(x, (-1,)).astype(jnp.float32)             # (N,)
    x_lm = jnp.zeros((2, n), jnp.float32).at[0].set(x)        # lane-major, padded
    s1, s2, s3 = pack_params(all_params)
    num_layers = len(all_params)

    def full(arr):
        nd = arr.ndim
        return pl.BlockSpec(arr.shape, lambda i, _nd=nd: (0,) * _nd)

    kernel = functools.partial(_soft_agg_net_kernel, int(k), num_layers)
    soft = pl.pallas_call(
        kernel,
        out_shape=jax.ShapeDtypeStruct((1, n), jnp.float32),
        grid=(1,),
        in_specs=[full(a_norm), full(x_lm), full(s1), full(s2), full(s3)],
        out_specs=pl.BlockSpec((1, n), lambda i: (0, 0)),
        compiler_params=pltpu.CompilerParams(
            dimension_semantics=("arbitrary",)),
    )(a_norm, x_lm, s1, s2, s3)
    return soft[0], edge_attr


def init_layer_params(key, in_channels):
    """Deterministic params for one SoftAggLayer: 3 TAGConv(K=3) stacks."""
    dims = [(in_channels, 8), (8, 8), (8, 1)]
    params = []
    for ci, co in dims:
        key, kw, kb = jax.random.split(key, 3)
        w = jax.random.normal(kw, (4, ci, co), jnp.float32) / jnp.sqrt(4.0 * ci)
        b = jax.random.normal(kb, (1, co), jnp.float32) * 0.01
        params.extend([w, b])
    return key, tuple(params)


def build_normalized_adjacency(key, n, p_edge=0.15):
    """Random undirected weighted graph densified + gcn_norm (no self loops)."""
    km, kw = jax.random.split(key)
    mask = (jax.random.uniform(km, (n, n)) < p_edge).astype(jnp.float32)
    mask = jnp.triu(mask, 1)
    mask = mask + mask.T                               # symmetric, zero diag
    w = jax.random.uniform(kw, (n, n), jnp.float32)
    w = (w + w.T) * 0.5
    A = jnp.abs(mask * w)                              # abs(edge_attr)
    deg = jnp.sum(A, axis=1)
    dinv = jnp.where(deg > 0, jax.lax.rsqrt(deg), 0.0)
    a_norm = A * dinv[:, None] * dinv[None, :]
    return a_norm, w * mask                            # (A_norm, dense edge_attr)


if __name__ == "__main__":
    N = 128
    ALPHA = 1.0 / 9.0
    K_TOP = int(N * ALPHA)                             # = 14
    ITERATIONS = 4

    key = jax.random.PRNGKey(0)
    key, kg, kx = jax.random.split(key, 3)
    a_norm, edge_attr = build_normalized_adjacency(kg, N)
    x0 = jax.random.uniform(kx, (N,), jnp.float32)     # D.x ~ torch.rand(N)

    all_params = []
    for i in range(ITERATIONS):
        key, params = init_layer_params(key, 1 if i == 0 else 2)
        all_params.append(params)

    out, ea = soft_agg_net(a_norm, x0, edge_attr, all_params, K_TOP)
    out = jax.block_until_ready(out)
    ea = jax.block_until_ready(ea)
    assert out.shape == (N,) and bool(jnp.all(jnp.isfinite(out)))
    assert bool(jnp.all((out > 0.0) & (out < 1.0)))    # sigmoid output range
    print("KERNEL_OK")
</pallas_src>

<mosaic_0001>
module attributes {stable_mosaic.version = 11 : i64} {
  func.func @_soft_agg_net_kernel(%arg0: i32, %arg1: memref<128x128xf32, #tpu.memory_space<vmem>>, %arg2: memref<2x128xf32, #tpu.memory_space<vmem>>, %arg3: memref<4x8x9xf32, #tpu.memory_space<vmem>>, %arg4: memref<4x8x33xf32, #tpu.memory_space<vmem>>, %arg5: memref<4x1x33xf32, #tpu.memory_space<vmem>>, %arg6: memref<1x128xf32, #tpu.memory_space<vmem>>) attributes {dimension_semantics = [#tpu.dimension_semantics<arbitrary>], iteration_bounds = array<i64: 1>, scalar_prefetch = 0 : i64, scratch_operands = 0 : i64, tpu.core_type = #tpu.core_type<tc>, window_params = [{pipeline_mode = #tpu.pipeline_mode<synchronous>, transform_indices = @transform_0, window_bounds = array<i64: 128, 128>}, {pipeline_mode = #tpu.pipeline_mode<synchronous>, transform_indices = @transform_1, window_bounds = array<i64: 2, 128>}, {pipeline_mode = #tpu.pipeline_mode<synchronous>, transform_indices = @transform_2, window_bounds = array<i64: 4, 8, 9>}, {pipeline_mode = #tpu.pipeline_mode<synchronous>, transform_indices = @transform_3, window_bounds = array<i64: 4, 8, 33>}, {pipeline_mode = #tpu.pipeline_mode<synchronous>, transform_indices = @transform_4, window_bounds = array<i64: 4, 1, 33>}, {pipeline_mode = #tpu.pipeline_mode<synchronous>, transform_indices = @transform_5, window_bounds = array<i64: 1, 128>}]} {
    %c0 = arith.constant 0 : index
    %c0_0 = arith.constant 0 : index
    %0 = vector.load %arg1[%c0, %c0_0] : memref<128x128xf32, #tpu.memory_space<vmem>>, vector<128x128xf32>
    %cst = arith.constant 1.000000e+00 : f32
    %1 = vector.broadcast %cst : f32 to vector<1x128xf32>
    %c0_1 = arith.constant 0 : index
    %c0_2 = arith.constant 0 : index
    %2 = vector.load %arg2[%c0_1, %c0_2] : memref<2x128xf32, #tpu.memory_space<vmem>>, vector<2x128xf32>
    %c0_3 = arith.constant 0 : index
    %c0_4 = arith.constant 0 : index
    %c0_5 = arith.constant 0 : index
    %3 = vector.load %arg3[%c0_3, %c0_4, %c0_5] : memref<4x8x9xf32, #tpu.memory_space<vmem>>, vector<1x8x9xf32>
    %4 = vector.shape_cast %3 : vector<1x8x9xf32> to vector<8x9xf32>
    %cst_6 = arith.constant dense<0.000000e+00> : vector<2x128xf32>
    %5 = tpu.matmul %2, %0, %cst_6 {dimension_numbers = #tpu.dot_dimension_numbers<[1], [0], [0], [1], [0, 0, 1, 1], [], []>} : vector<2x128xf32>, vector<128x128xf32>, vector<2x128xf32> -> vector<2x128xf32>
    %cst_7 = arith.constant dense<0.000000e+00> : vector<2x128xf32>
    %6 = tpu.matmul %5, %0, %cst_7 {dimension_numbers = #tpu.dot_dimension_numbers<[1], [0], [0], [1], [0, 0, 1, 1], [], []>} : vector<2x128xf32>, vector<128x128xf32>, vector<2x128xf32> -> vector<2x128xf32>
    %cst_8 = arith.constant dense<0.000000e+00> : vector<2x128xf32>
    %7 = tpu.matmul %6, %0, %cst_8 {dimension_numbers = #tpu.dot_dimension_numbers<[1], [0], [0], [1], [0, 0, 1, 1], [], []>} : vector<2x128xf32>, vector<128x128xf32>, vector<2x128xf32> -> vector<2x128xf32>
    %8 = tpu.concatenate %2, %5, %6, %7, %1 in 0 : vector<2x128xf32>, vector<2x128xf32>, vector<2x128xf32>, vector<2x128xf32>, vector<1x128xf32> -> vector<9x128xf32>
    %cst_9 = arith.constant dense<0.000000e+00> : vector<8x128xf32>
    %9 = tpu.matmul %4, %8, %cst_9 {dimension_numbers = #tpu.dot_dimension_numbers<[1], [0], [0], [1], [0, 0, 1, 1], [], []>} : vector<8x9xf32>, vector<9x128xf32>, vector<8x128xf32> -> vector<8x128xf32>
    %cst_10 = arith.constant 0.000000e+00 : f32
    %10 = vector.broadcast %cst_10 : f32 to vector<8x128xf32>
    %11 = arith.maximumf %9, %10 : vector<8x128xf32>
    %c0_11 = arith.constant 0 : index
    %c0_12 = arith.constant 0 : index
    %c0_13 = arith.constant 0 : index
    %12 = vector.load %arg4[%c0_11, %c0_12, %c0_13] : memref<4x8x33xf32, #tpu.memory_space<vmem>>, vector<1x8x33xf32>
    %13 = vector.shape_cast %12 : vector<1x8x33xf32> to vector<8x33xf32>
    %cst_14 = arith.constant dense<0.000000e+00> : vector<8x128xf32>
    %14 = tpu.matmul %11, %0, %cst_14 {dimension_numbers = #tpu.dot_dimension_numbers<[1], [0], [0], [1], [0, 0, 1, 1], [], []>} : vector<8x128xf32>, vector<128x128xf32>, vector<8x128xf32> -> vector<8x128xf32>
    %cst_15 = arith.constant dense<0.000000e+00> : vector<8x128xf32>
    %15 = tpu.matmul %14, %0, %cst_15 {dimension_numbers = #tpu.dot_dimension_numbers<[1], [0], [0], [1], [0, 0, 1, 1], [], []>} : vector<8x128xf32>, vector<128x128xf32>, vector<8x128xf32> -> vector<8x128xf32>
    %cst_16 = arith.constant dense<0.000000e+00> : vector<8x128xf32>
    %16 = tpu.matmul %15, %0, %cst_16 {dimension_numbers = #tpu.dot_dimension_numbers<[1], [0], [0], [1], [0, 0, 1, 1], [], []>} : vector<8x128xf32>, vector<128x128xf32>, vector<8x128xf32> -> vector<8x128xf32>
    %17 = tpu.concatenate %11, %14, %15, %16, %1 in 0 : vector<8x128xf32>, vector<8x128xf32>, vector<8x128xf32>, vector<8x128xf32>, vector<1x128xf32> -> vector<33x128xf32>
    %cst_17 = arith.constant dense<0.000000e+00> : vector<8x128xf32>
    %18 = tpu.matmul %13, %17, %cst_17 {dimension_numbers = #tpu.dot_dimension_numbers<[1], [0], [0], [1], [0, 0, 1, 1], [], []>} : vector<8x33xf32>, vector<33x128xf32>, vector<8x128xf32> -> vector<8x128xf32>
    %cst_18 = arith.constant 0.000000e+00 : f32
    %19 = vector.broadcast %cst_18 : f32 to vector<8x128xf32>
    %20 = arith.maximumf %18, %19 : vector<8x128xf32>
    %c0_19 = arith.constant 0 : index
    %c0_20 = arith.constant 0 : index
    %c0_21 = arith.constant 0 : index
    %21 = vector.load %arg5[%c0_19, %c0_20, %c0_21] : memref<4x1x33xf32, #tpu.memory_space<vmem>>, vector<1x1x33xf32>
    %22 = vector.shape_cast %21 : vector<1x1x33xf32> to vector<1x33xf32>
    %cst_22 = arith.constant dense<0.000000e+00> : vector<8x128xf32>
    %23 = tpu.matmul %20, %0, %cst_22 {dimension_numbers = #tpu.dot_dimension_numbers<[1], [0], [0], [1], [0, 0, 1, 1], [], []>} : vector<8x128xf32>, vector<128x128xf32>, vector<8x128xf32> -> vector<8x128xf32>
    %cst_23 = arith.constant dense<0.000000e+00> : vector<8x128xf32>
    %24 = tpu.matmul %23, %0, %cst_23 {dimension_numbers = #tpu.dot_dimension_numbers<[1], [0], [0], [1], [0, 0, 1, 1], [], []>} : vector<8x128xf32>, vector<128x128xf32>, vector<8x128xf32> -> vector<8x128xf32>
    %cst_24 = arith.constant dense<0.000000e+00> : vector<8x128xf32>
    %25 = tpu.matmul %24, %0, %cst_24 {dimension_numbers = #tpu.dot_dimension_numbers<[1], [0], [0], [1], [0, 0, 1, 1], [], []>} : vector<8x128xf32>, vector<128x128xf32>, vector<8x128xf32> -> vector<8x128xf32>
    %26 = tpu.concatenate %20, %23, %24, %25, %1 in 0 : vector<8x128xf32>, vector<8x128xf32>, vector<8x128xf32>, vector<8x128xf32>, vector<1x128xf32> -> vector<33x128xf32>
    %cst_25 = arith.constant dense<0.000000e+00> : vector<1x128xf32>
    %27 = tpu.matmul %22, %26, %cst_25 {dimension_numbers = #tpu.dot_dimension_numbers<[1], [0], [0], [1], [0, 0, 1, 1], [], []>} : vector<1x33xf32>, vector<33x128xf32>, vector<1x128xf32> -> vector<1x128xf32>
    %cst_26 = arith.constant 0.000000e+00 : f32
    %28 = vector.broadcast %cst_26 : f32 to vector<1x128xf32>
    %29 = arith.maximumf %27, %28 : vector<1x128xf32>
    %cst_27 = arith.constant dense<0.000000e+00> : vector<1xf32>
    %30 = vector.multi_reduction <add>, %29, %cst_27 [1] : vector<1x128xf32> to vector<1xf32>
    %31 = vector.shape_cast %30 : vector<1xf32> to vector<1x1xf32>
    %cst_28 = arith.constant 1.280000e+02 : f32
    %32 = vector.broadcast %cst_28 : f32 to vector<1x1xf32>
    %33 = arith.divf %31, %32 : vector<1x1xf32>
    %34 = vector.broadcast %33 : vector<1x1xf32> to vector<1x128xf32>
    %35 = arith.subf %29, %34 : vector<1x128xf32>
    %36 = arith.mulf %35, %35 : vector<1x128xf32>
    %cst_29 = arith.constant dense<0.000000e+00> : vector<1xf32>
    %37 = vector.multi_reduction <add>, %36, %cst_29 [1] : vector<1x128xf32> to vector<1xf32>
    %38 = vector.shape_cast %37 : vector<1xf32> to vector<1x1xf32>
    %cst_30 = arith.constant 1.280000e+02 : f32
    %39 = vector.broadcast %cst_30 : f32 to vector<1x1xf32>
    %40 = arith.divf %38, %39 : vector<1x1xf32>
    %41 = vector.broadcast %33 : vector<1x1xf32> to vector<1x128xf32>
    %42 = arith.subf %29, %41 : vector<1x128xf32>
    %cst_31 = arith.constant 9.99999974E-6 : f32
    %43 = vector.broadcast %cst_31 : f32 to vector<1x1xf32>
    %44 = arith.addf %40, %43 : vector<1x1xf32>
    %45 = math.rsqrt %44 : vector<1x1xf32>
    %46 = vector.broadcast %45 : vector<1x1xf32> to vector<1x128xf32>
    %47 = arith.mulf %42, %46 : vector<1x128xf32>
    %48 = tpu.transpose %47, [1, 0] : vector<1x128xf32> -> vector<128x1xf32>
    %49 = vector.broadcast %48 : vector<128x1xf32> to vector<128x128xf32>
    %50 = vector.broadcast %47 : vector<1x128xf32> to vector<128x128xf32>
    %51 = arith.cmpf ogt, %49, %50 : vector<128x128xf32>
    %52 = arith.extui %51 : vector<128x128xi1> to vector<128x128xi32>
    %53 = arith.sitofp %52 : vector<128x128xi32> to vector<128x128xf32>
    %cst_32 = arith.constant dense<0.000000e+00> : vector<128xf32>
    %54 = vector.multi_reduction <add>, %53, %cst_32 [0] : vector<128x128xf32> to vector<128xf32>
    %55 = vector.shape_cast %54 : vector<128xf32> to vector<1x128xf32>
    %cst_33 = arith.constant 1.400000e+01 : f32
    %56 = vector.broadcast %cst_33 : f32 to vector<1x128xf32>
    %57 = arith.cmpf olt, %55, %56 : vector<1x128xf32>
    %cst_34 = arith.constant 0x7F800000 : f32
    %58 = vector.broadcast %cst_34 : f32 to vector<1x128xf32>
    %59 = arith.select %57, %47, %58 : vector<1x128xi1>, vector<1x128xf32>
    %cst_35 = arith.constant dense<0x7F800000> : vector<1xf32>
    %60 = vector.multi_reduction <minimumf>, %59, %cst_35 [1] : vector<1x128xf32> to vector<1xf32>
    %61 = vector.shape_cast %60 : vector<1xf32> to vector<1x1xf32>
    %62 = math.absf %61 : vector<1x1xf32>
    %cst_36 = arith.constant 1.000000e+00 : f32
    %cst_37 = arith.constant -1.000000e+00 : f32
    %63 = vector.broadcast %cst_36 : f32 to vector<1x128xf32>
    %64 = vector.broadcast %cst_37 : f32 to vector<1x128xf32>
    %65 = arith.select %57, %63, %64 : vector<1x128xi1>, vector<1x128xf32>
    %66 = vector.broadcast %62 : vector<1x1xf32> to vector<1x128xf32>
    %67 = arith.subf %47, %66 : vector<1x128xf32>
    %cst_38 = arith.constant 1.000000e-01 : f32
    %68 = vector.broadcast %cst_38 : f32 to vector<1x128xf32>
    %69 = arith.mulf %65, %68 : vector<1x128xf32>
    %70 = arith.addf %67, %69 : vector<1x128xf32>
    %71 = arith.negf %70 : vector<1x128xf32>
    %72 = math.exp %71 : vector<1x128xf32>
    %cst_39 = arith.constant 1.000000e+00 : f32
    %73 = vector.broadcast %cst_39 : f32 to vector<1x128xf32>
    %74 = arith.addf %73, %72 : vector<1x128xf32>
    %75 = arith.divf %73, %74 : vector<1x128xf32>
    %76 = tpu.concatenate %47, %75 in 0 : vector<1x128xf32>, vector<1x128xf32> -> vector<2x128xf32>
    %c1 = arith.constant 1 : index
    %c0_40 = arith.constant 0 : index
    %c0_41 = arith.constant 0 : index
    %77 = vector.load %arg3[%c1, %c0_40, %c0_41] : memref<4x8x9xf32, #tpu.memory_space<vmem>>, vector<1x8x9xf32>
    %78 = vector.shape_cast %77 : vector<1x8x9xf32> to vector<8x9xf32>
    %cst_42 = arith.constant dense<0.000000e+00> : vector<2x128xf32>
    %79 = tpu.matmul %76, %0, %cst_42 {dimension_numbers = #tpu.dot_dimension_numbers<[1], [0], [0], [1], [0, 0, 1, 1], [], []>} : vector<2x128xf32>, vector<128x128xf32>, vector<2x128xf32> -> vector<2x128xf32>
    %cst_43 = arith.constant dense<0.000000e+00> : vector<2x128xf32>
    %80 = tpu.matmul %79, %0, %cst_43 {dimension_numbers = #tpu.dot_dimension_numbers<[1], [0], [0], [1], [0, 0, 1, 1], [], []>} : vector<2x128xf32>, vector<128x128xf32>, vector<2x128xf32> -> vector<2x128xf32>
    %cst_44 = arith.constant dense<0.000000e+00> : vector<2x128xf32>
    %81 = tpu.matmul %80, %0, %cst_44 {dimension_numbers = #tpu.dot_dimension_numbers<[1], [0], [0], [1], [0, 0, 1, 1], [], []>} : vector<2x128xf32>, vector<128x128xf32>, vector<2x128xf32> -> vector<2x128xf32>
    %82 = tpu.concatenate %76, %79, %80, %81, %1 in 0 : vector<2x128xf32>, vector<2x128xf32>, vector<2x128xf32>, vector<2x128xf32>, vector<1x128xf32> -> vector<9x128xf32>
    %cst_45 = arith.constant dense<0.000000e+00> : vector<8x128xf32>
    %83 = tpu.matmul %78, %82, %cst_45 {dimension_numbers = #tpu.dot_dimension_numbers<[1], [0], [0], [1], [0, 0, 1, 1], [], []>} : vector<8x9xf32>, vector<9x128xf32>, vector<8x128xf32> -> vector<8x128xf32>
    %cst_46 = arith.constant 0.000000e+00 : f32
    %84 = vector.broadcast %cst_46 : f32 to vector<8x128xf32>
    %85 = arith.maximumf %83, %84 : vector<8x128xf32>
    %c1_47 = arith.constant 1 : index
    %c0_48 = arith.constant 0 : index
    %c0_49 = arith.constant 0 : index
    %86 = vector.load %arg4[%c1_47, %c0_48, %c0_49] : memref<4x8x33xf32, #tpu.memory_space<vmem>>, vector<1x8x33xf32>
    %87 = vector.shape_cast %86 : vector<1x8x33xf32> to vector<8x33xf32>
    %cst_50 = arith.constant dense<0.000000e+00> : vector<8x128xf32>
    %88 = tpu.matmul %85, %0, %cst_50 {dimension_numbers = #tpu.dot_dimension_numbers<[1], [0], [0], [1], [0, 0, 1, 1], [], []>} : vector<8x128xf32>, vector<128x128xf32>, vector<8x128xf32> -> vector<8x128xf32>
    %cst_51 = arith.constant dense<0.000000e+00> : vector<8x128xf32>
    %89 = tpu.matmul %88, %0, %cst_51 {dimension_numbers = #tpu.dot_dimension_numbers<[1], [0], [0], [1], [0, 0, 1, 1], [], []>} : vector<8x128xf32>, vector<128x128xf32>, vector<8x128xf32> -> vector<8x128xf32>
    %cst_52 = arith.constant dense<0.000000e+00> : vector<8x128xf32>
    %90 = tpu.matmul %89, %0, %cst_52 {dimension_numbers = #tpu.dot_dimension_numbers<[1], [0], [0], [1], [0, 0, 1, 1], [], []>} : vector<8x128xf32>, vector<128x128xf32>, vector<8x128xf32> -> vector<8x128xf32>
    %91 = tpu.concatenate %85, %88, %89, %90, %1 in 0 : vector<8x128xf32>, vector<8x128xf32>, vector<8x128xf32>, vector<8x128xf32>, vector<1x128xf32> -> vector<33x128xf32>
    %cst_53 = arith.constant dense<0.000000e+00> : vector<8x128xf32>
    %92 = tpu.matmul %87, %91, %cst_53 {dimension_numbers = #tpu.dot_dimension_numbers<[1], [0], [0], [1], [0, 0, 1, 1], [], []>} : vector<8x33xf32>, vector<33x128xf32>, vector<8x128xf32> -> vector<8x128xf32>
    %cst_54 = arith.constant 0.000000e+00 : f32
    %93 = vector.broadcast %cst_54 : f32 to vector<8x128xf32>
    %94 = arith.maximumf %92, %93 : vector<8x128xf32>
    %c1_55 = arith.constant 1 : index
    %c0_56 = arith.constant 0 : index
    %c0_57 = arith.constant 0 : index
    %95 = vector.load %arg5[%c1_55, %c0_56, %c0_57] : memref<4x1x33xf32, #tpu.memory_space<vmem>>, vector<1x1x33xf32>
    %96 = vector.shape_cast %95 : vector<1x1x33xf32> to vector<1x33xf32>
    %cst_58 = arith.constant dense<0.000000e+00> : vector<8x128xf32>
    %97 = tpu.matmul %94, %0, %cst_58 {dimension_numbers = #tpu.dot_dimension_numbers<[1], [0], [0], [1], [0, 0, 1, 1], [], []>} : vector<8x128xf32>, vector<128x128xf32>, vector<8x128xf32> -> vector<8x128xf32>
    %cst_59 = arith.constant dense<0.000000e+00> : vector<8x128xf32>
    %98 = tpu.matmul %97, %0, %cst_59 {dimension_numbers = #tpu.dot_dimension_numbers<[1], [0], [0], [1], [0, 0, 1, 1], [], []>} : vector<8x128xf32>, vector<128x128xf32>, vector<8x128xf32> -> vector<8x128xf32>
    %cst_60 = arith.constant dense<0.000000e+00> : vector<8x128xf32>
    %99 = tpu.matmul %98, %0, %cst_60 {dimension_numbers = #tpu.dot_dimension_numbers<[1], [0], [0], [1], [0, 0, 1, 1], [], []>} : vector<8x128xf32>, vector<128x128xf32>, vector<8x128xf32> -> vector<8x128xf32>
    %100 = tpu.concatenate %94, %97, %98, %99, %1 in 0 : vector<8x128xf32>, vector<8x128xf32>, vector<8x128xf32>, vector<8x128xf32>, vector<1x128xf32> -> vector<33x128xf32>
    %cst_61 = arith.constant dense<0.000000e+00> : vector<1x128xf32>
    %101 = tpu.matmul %96, %100, %cst_61 {dimension_numbers = #tpu.dot_dimension_numbers<[1], [0], [0], [1], [0, 0, 1, 1], [], []>} : vector<1x33xf32>, vector<33x128xf32>, vector<1x128xf32> -> vector<1x128xf32>
    %cst_62 = arith.constant 0.000000e+00 : f32
    %102 = vector.broadcast %cst_62 : f32 to vector<1x128xf32>
    %103 = arith.maximumf %101, %102 : vector<1x128xf32>
    %cst_63 = arith.constant dense<0.000000e+00> : vector<1xf32>
    %104 = vector.multi_reduction <add>, %103, %cst_63 [1] : vector<1x128xf32> to vector<1xf32>
    %105 = vector.shape_cast %104 : vector<1xf32> to vector<1x1xf32>
    %cst_64 = arith.constant 1.280000e+02 : f32
    %106 = vector.broadcast %cst_64 : f32 to vector<1x1xf32>
    %107 = arith.divf %105, %106 : vector<1x1xf32>
    %108 = vector.broadcast %107 : vector<1x1xf32> to vector<1x128xf32>
    %109 = arith.subf %103, %108 : vector<1x128xf32>
    %110 = arith.mulf %109, %109 : vector<1x128xf32>
    %cst_65 = arith.constant dense<0.000000e+00> : vector<1xf32>
    %111 = vector.multi_reduction <add>, %110, %cst_65 [1] : vector<1x128xf32> to vector<1xf32>
    %112 = vector.shape_cast %111 : vector<1xf32> to vector<1x1xf32>
    %cst_66 = arith.constant 1.280000e+02 : f32
    %113 = vector.broadcast %cst_66 : f32 to vector<1x1xf32>
    %114 = arith.divf %112, %113 : vector<1x1xf32>
    %115 = vector.broadcast %107 : vector<1x1xf32> to vector<1x128xf32>
    %116 = arith.subf %103, %115 : vector<1x128xf32>
    %cst_67 = arith.constant 9.99999974E-6 : f32
    %117 = vector.broadcast %cst_67 : f32 to vector<1x1xf32>
    %118 = arith.addf %114, %117 : vector<1x1xf32>
    %119 = math.rsqrt %118 : vector<1x1xf32>
    %120 = vector.broadcast %119 : vector<1x1xf32> to vector<1x128xf32>
    %121 = arith.mulf %116, %120 : vector<1x128xf32>
    %122 = tpu.transpose %121, [1, 0] : vector<1x128xf32> -> vector<128x1xf32>
    %123 = vector.broadcast %122 : vector<128x1xf32> to vector<128x128xf32>
    %124 = vector.broadcast %121 : vector<1x128xf32> to vector<128x128xf32>
    %125 = arith.cmpf ogt, %123, %124 : vector<128x128xf32>
    %126 = arith.extui %125 : vector<128x128xi1> to vector<128x128xi32>
    %127 = arith.sitofp %126 : vector<128x128xi32> to vector<128x128xf32>
    %cst_68 = arith.constant dense<0.000000e+00> : vector<128xf32>
    %128 = vector.multi_reduction <add>, %127, %cst_68 [0] : vector<128x128xf32> to vector<128xf32>
    %129 = vector.shape_cast %128 : vector<128xf32> to vector<1x128xf32>
    %cst_69 = arith.constant 1.400000e+01 : f32
    %130 = vector.broadcast %cst_69 : f32 to vector<1x128xf32>
    %131 = arith.cmpf olt, %129, %130 : vector<1x128xf32>
    %cst_70 = arith.constant 0x7F800000 : f32
    %132 = vector.broadcast %cst_70 : f32 to vector<1x128xf32>
    %133 = arith.select %131, %121, %132 : vector<1x128xi1>, vector<1x128xf32>
    %cst_71 = arith.constant dense<0x7F800000> : vector<1xf32>
    %134 = vector.multi_reduction <minimumf>, %133, %cst_71 [1] : vector<1x128xf32> to vector<1xf32>
    %135 = vector.shape_cast %134 : vector<1xf32> to vector<1x1xf32>
    %136 = math.absf %135 : vector<1x1xf32>
    %cst_72 = arith.constant 1.000000e+00 : f32
    %cst_73 = arith.constant -1.000000e+00 : f32
    %137 = vector.broadcast %cst_72 : f32 to vector<1x128xf32>
    %138 = vector.broadcast %cst_73 : f32 to vector<1x128xf32>
    %139 = arith.select %131, %137, %138 : vector<1x128xi1>, vector<1x128xf32>
    %140 = vector.broadcast %136 : vector<1x1xf32> to vector<1x128xf32>
    %141 = arith.subf %121, %140 : vector<1x128xf32>
    %cst_74 = arith.constant 1.000000e-01 : f32
    %142 = vector.broadcast %cst_74 : f32 to vector<1x128xf32>
    %143 = arith.mulf %139, %142 : vector<1x128xf32>
    %144 = arith.addf %141, %143 : vector<1x128xf32>
    %145 = arith.negf %144 : vector<1x128xf32>
    %146 = math.exp %145 : vector<1x128xf32>
    %cst_75 = arith.constant 1.000000e+00 : f32
    %147 = vector.broadcast %cst_75 : f32 to vector<1x128xf32>
    %148 = arith.addf %147, %146 : vector<1x128xf32>
    %149 = arith.divf %147, %148 : vector<1x128xf32>
    %150 = tpu.concatenate %121, %149 in 0 : vector<1x128xf32>, vector<1x128xf32> -> vector<2x128xf32>
    %c2 = arith.constant 2 : index
    %c0_76 = arith.constant 0 : index
    %c0_77 = arith.constant 0 : index
    %151 = vector.load %arg3[%c2, %c0_76, %c0_77] : memref<4x8x9xf32, #tpu.memory_space<vmem>>, vector<1x8x9xf32>
    %152 = vector.shape_cast %151 : vector<1x8x9xf32> to vector<8x9xf32>
    %cst_78 = arith.constant dense<0.000000e+00> : vector<2x128xf32>
    %153 = tpu.matmul %150, %0, %cst_78 {dimension_numbers = #tpu.dot_dimension_numbers<[1], [0], [0], [1], [0, 0, 1, 1], [], []>} : vector<2x128xf32>, vector<128x128xf32>, vector<2x128xf32> -> vector<2x128xf32>
    %cst_79 = arith.constant dense<0.000000e+00> : vector<2x128xf32>
    %154 = tpu.matmul %153, %0, %cst_79 {dimension_numbers = #tpu.dot_dimension_numbers<[1], [0], [0], [1], [0, 0, 1, 1], [], []>} : vector<2x128xf32>, vector<128x128xf32>, vector<2x128xf32> -> vector<2x128xf32>
    %cst_80 = arith.constant dense<0.000000e+00> : vector<2x128xf32>
    %155 = tpu.matmul %154, %0, %cst_80 {dimension_numbers = #tpu.dot_dimension_numbers<[1], [0], [0], [1], [0, 0, 1, 1], [], []>} : vector<2x128xf32>, vector<128x128xf32>, vector<2x128xf32> -> vector<2x128xf32>
    %156 = tpu.concatenate %150, %153, %154, %155, %1 in 0 : vector<2x128xf32>, vector<2x128xf32>, vector<2x128xf32>, vector<2x128xf32>, vector<1x128xf32> -> vector<9x128xf32>
    %cst_81 = arith.constant dense<0.000000e+00> : vector<8x128xf32>
    %157 = tpu.matmul %152, %156, %cst_81 {dimension_numbers = #tpu.dot_dimension_numbers<[1], [0], [0], [1], [0, 0, 1, 1], [], []>} : vector<8x9xf32>, vector<9x128xf32>, vector<8x128xf32> -> vector<8x128xf32>
    %cst_82 = arith.constant 0.000000e+00 : f32
    %158 = vector.broadcast %cst_82 : f32 to vector<8x128xf32>
    %159 = arith.maximumf %157, %158 : vector<8x128xf32>
    %c2_83 = arith.constant 2 : index
    %c0_84 = arith.constant 0 : index
    %c0_85 = arith.constant 0 : index
    %160 = vector.load %arg4[%c2_83, %c0_84, %c0_85] : memref<4x8x33xf32, #tpu.memory_space<vmem>>, vector<1x8x33xf32>
    %161 = vector.shape_cast %160 : vector<1x8x33xf32> to vector<8x33xf32>
    %cst_86 = arith.constant dense<0.000000e+00> : vector<8x128xf32>
    %162 = tpu.matmul %159, %0, %cst_86 {dimension_numbers = #tpu.dot_dimension_numbers<[1], [0], [0], [1], [0, 0, 1, 1], [], []>} : vector<8x128xf32>, vector<128x128xf32>, vector<8x128xf32> -> vector<8x128xf32>
    %cst_87 = arith.constant dense<0.000000e+00> : vector<8x128xf32>
    %163 = tpu.matmul %162, %0, %cst_87 {dimension_numbers = #tpu.dot_dimension_numbers<[1], [0], [0], [1], [0, 0, 1, 1], [], []>} : vector<8x128xf32>, vector<128x128xf32>, vector<8x128xf32> -> vector<8x128xf32>
    %cst_88 = arith.constant dense<0.000000e+00> : vector<8x128xf32>
    %164 = tpu.matmul %163, %0, %cst_88 {dimension_numbers = #tpu.dot_dimension_numbers<[1], [0], [0], [1], [0, 0, 1, 1], [], []>} : vector<8x128xf32>, vector<128x128xf32>, vector<8x128xf32> -> vector<8x128xf32>
    %165 = tpu.concatenate %159, %162, %163, %164, %1 in 0 : vector<8x128xf32>, vector<8x128xf32>, vector<8x128xf32>, vector<8x128xf32>, vector<1x128xf32> -> vector<33x128xf32>
    %cst_89 = arith.constant dense<0.000000e+00> : vector<8x128xf32>
    %166 = tpu.matmul %161, %165, %cst_89 {dimension_numbers = #tpu.dot_dimension_numbers<[1], [0], [0], [1], [0, 0, 1, 1], [], []>} : vector<8x33xf32>, vector<33x128xf32>, vector<8x128xf32> -> vector<8x128xf32>
    %cst_90 = arith.constant 0.000000e+00 : f32
    %167 = vector.broadcast %cst_90 : f32 to vector<8x128xf32>
    %168 = arith.maximumf %166, %167 : vector<8x128xf32>
    %c2_91 = arith.constant 2 : index
    %c0_92 = arith.constant 0 : index
    %c0_93 = arith.constant 0 : index
    %169 = vector.load %arg5[%c2_91, %c0_92, %c0_93] : memref<4x1x33xf32, #tpu.memory_space<vmem>>, vector<1x1x33xf32>
    %170 = vector.shape_cast %169 : vector<1x1x33xf32> to vector<1x33xf32>
    %cst_94 = arith.constant dense<0.000000e+00> : vector<8x128xf32>
    %171 = tpu.matmul %168, %0, %cst_94 {dimension_numbers = #tpu.dot_dimension_numbers<[1], [0], [0], [1], [0, 0, 1, 1], [], []>} : vector<8x128xf32>, vector<128x128xf32>, vector<8x128xf32> -> vector<8x128xf32>
    %cst_95 = arith.constant dense<0.000000e+00> : vector<8x128xf32>
    %172 = tpu.matmul %171, %0, %cst_95 {dimension_numbers = #tpu.dot_dimension_numbers<[1], [0], [0], [1], [0, 0, 1, 1], [], []>} : vector<8x128xf32>, vector<128x128xf32>, vector<8x128xf32> -> vector<8x128xf32>
    %cst_96 = arith.constant dense<0.000000e+00> : vector<8x128xf32>
    %173 = tpu.matmul %172, %0, %cst_96 {dimension_numbers = #tpu.dot_dimension_numbers<[1], [0], [0], [1], [0, 0, 1, 1], [], []>} : vector<8x128xf32>, vector<128x128xf32>, vector<8x128xf32> -> vector<8x128xf32>
    %174 = tpu.concatenate %168, %171, %172, %173, %1 in 0 : vector<8x128xf32>, vector<8x128xf32>, vector<8x128xf32>, vector<8x128xf32>, vector<1x128xf32> -> vector<33x128xf32>
    %cst_97 = arith.constant dense<0.000000e+00> : vector<1x128xf32>
    %175 = tpu.matmul %170, %174, %cst_97 {dimension_numbers = #tpu.dot_dimension_numbers<[1], [0], [0], [1], [0, 0, 1, 1], [], []>} : vector<1x33xf32>, vector<33x128xf32>, vector<1x128xf32> -> vector<1x128xf32>
    %cst_98 = arith.constant 0.000000e+00 : f32
    %176 = vector.broadcast %cst_98 : f32 to vector<1x128xf32>
    %177 = arith.maximumf %175, %176 : vector<1x128xf32>
    %cst_99 = arith.constant dense<0.000000e+00> : vector<1xf32>
    %178 = vector.multi_reduction <add>, %177, %cst_99 [1] : vector<1x128xf32> to vector<1xf32>
    %179 = vector.shape_cast %178 : vector<1xf32> to vector<1x1xf32>
    %cst_100 = arith.constant 1.280000e+02 : f32
    %180 = vector.broadcast %cst_100 : f32 to vector<1x1xf32>
    %181 = arith.divf %179, %180 : vector<1x1xf32>
    %182 = vector.broadcast %181 : vector<1x1xf32> to vector<1x128xf32>
    %183 = arith.subf %177, %182 : vector<1x128xf32>
    %184 = arith.mulf %183, %183 : vector<1x128xf32>
    %cst_101 = arith.constant dense<0.000000e+00> : vector<1xf32>
    %185 = vector.multi_reduction <add>, %184, %cst_101 [1] : vector<1x128xf32> to vector<1xf32>
    %186 = vector.shape_cast %185 : vector<1xf32> to vector<1x1xf32>
    %cst_102 = arith.constant 1.280000e+02 : f32
    %187 = vector.broadcast %cst_102 : f32 to vector<1x1xf32>
    %188 = arith.divf %186, %187 : vector<1x1xf32>
    %189 = vector.broadcast %181 : vector<1x1xf32> to vector<1x128xf32>
    %190 = arith.subf %177, %189 : vector<1x128xf32>
    %cst_103 = arith.constant 9.99999974E-6 : f32
    %191 = vector.broadcast %cst_103 : f32 to vector<1x1xf32>
    %192 = arith.addf %188, %191 : vector<1x1xf32>
    %193 = math.rsqrt %192 : vector<1x1xf32>
    %194 = vector.broadcast %193 : vector<1x1xf32> to vector<1x128xf32>
    %195 = arith.mulf %190, %194 : vector<1x128xf32>
    %196 = tpu.transpose %195, [1, 0] : vector<1x128xf32> -> vector<128x1xf32>
    %197 = vector.broadcast %196 : vector<128x1xf32> to vector<128x128xf32>
    %198 = vector.broadcast %195 : vector<1x128xf32> to vector<128x128xf32>
    %199 = arith.cmpf ogt, %197, %198 : vector<128x128xf32>
    %200 = arith.extui %199 : vector<128x128xi1> to vector<128x128xi32>
    %201 = arith.sitofp %200 : vector<128x128xi32> to vector<128x128xf32>
    %cst_104 = arith.constant dense<0.000000e+00> : vector<128xf32>
    %202 = vector.multi_reduction <add>, %201, %cst_104 [0] : vector<128x128xf32> to vector<128xf32>
    %203 = vector.shape_cast %202 : vector<128xf32> to vector<1x128xf32>
    %cst_105 = arith.constant 1.400000e+01 : f32
    %204 = vector.broadcast %cst_105 : f32 to vector<1x128xf32>
    %205 = arith.cmpf olt, %203, %204 : vector<1x128xf32>
    %cst_106 = arith.constant 0x7F800000 : f32
    %206 = vector.broadcast %cst_106 : f32 to vector<1x128xf32>
    %207 = arith.select %205, %195, %206 : vector<1x128xi1>, vector<1x128xf32>
    %cst_107 = arith.constant dense<0x7F800000> : vector<1xf32>
    %208 = vector.multi_reduction <minimumf>, %207, %cst_107 [1] : vector<1x128xf32> to vector<1xf32>
    %209 = vector.shape_cast %208 : vector<1xf32> to vector<1x1xf32>
    %210 = math.absf %209 : vector<1x1xf32>
    %cst_108 = arith.constant 1.000000e+00 : f32
    %cst_109 = arith.constant -1.000000e+00 : f32
    %211 = vector.broadcast %cst_108 : f32 to vector<1x128xf32>
    %212 = vector.broadcast %cst_109 : f32 to vector<1x128xf32>
    %213 = arith.select %205, %211, %212 : vector<1x128xi1>, vector<1x128xf32>
    %214 = vector.broadcast %210 : vector<1x1xf32> to vector<1x128xf32>
    %215 = arith.subf %195, %214 : vector<1x128xf32>
    %cst_110 = arith.constant 1.000000e-01 : f32
    %216 = vector.broadcast %cst_110 : f32 to vector<1x128xf32>
    %217 = arith.mulf %213, %216 : vector<1x128xf32>
    %218 = arith.addf %215, %217 : vector<1x128xf32>
    %219 = arith.negf %218 : vector<1x128xf32>
    %220 = math.exp %219 : vector<1x128xf32>
    %cst_111 = arith.constant 1.000000e+00 : f32
    %221 = vector.broadcast %cst_111 : f32 to vector<1x128xf32>
    %222 = arith.addf %221, %220 : vector<1x128xf32>
    %223 = arith.divf %221, %222 : vector<1x128xf32>
    %224 = tpu.concatenate %195, %223 in 0 : vector<1x128xf32>, vector<1x128xf32> -> vector<2x128xf32>
    %c3 = arith.constant 3 : index
    %c0_112 = arith.constant 0 : index
    %c0_113 = arith.constant 0 : index
    %225 = vector.load %arg3[%c3, %c0_112, %c0_113] : memref<4x8x9xf32, #tpu.memory_space<vmem>>, vector<1x8x9xf32>
    %226 = vector.shape_cast %225 : vector<1x8x9xf32> to vector<8x9xf32>
    %cst_114 = arith.constant dense<0.000000e+00> : vector<2x128xf32>
    %227 = tpu.matmul %224, %0, %cst_114 {dimension_numbers = #tpu.dot_dimension_numbers<[1], [0], [0], [1], [0, 0, 1, 1], [], []>} : vector<2x128xf32>, vector<128x128xf32>, vector<2x128xf32> -> vector<2x128xf32>
    %cst_115 = arith.constant dense<0.000000e+00> : vector<2x128xf32>
    %228 = tpu.matmul %227, %0, %cst_115 {dimension_numbers = #tpu.dot_dimension_numbers<[1], [0], [0], [1], [0, 0, 1, 1], [], []>} : vector<2x128xf32>, vector<128x128xf32>, vector<2x128xf32> -> vector<2x128xf32>
    %cst_116 = arith.constant dense<0.000000e+00> : vector<2x128xf32>
    %229 = tpu.matmul %228, %0, %cst_116 {dimension_numbers = #tpu.dot_dimension_numbers<[1], [0], [0], [1], [0, 0, 1, 1], [], []>} : vector<2x128xf32>, vector<128x128xf32>, vector<2x128xf32> -> vector<2x128xf32>
    %230 = tpu.concatenate %224, %227, %228, %229, %1 in 0 : vector<2x128xf32>, vector<2x128xf32>, vector<2x128xf32>, vector<2x128xf32>, vector<1x128xf32> -> vector<9x128xf32>
    %cst_117 = arith.constant dense<0.000000e+00> : vector<8x128xf32>
    %231 = tpu.matmul %226, %230, %cst_117 {dimension_numbers = #tpu.dot_dimension_numbers<[1], [0], [0], [1], [0, 0, 1, 1], [], []>} : vector<8x9xf32>, vector<9x128xf32>, vector<8x128xf32> -> vector<8x128xf32>
    %cst_118 = arith.constant 0.000000e+00 : f32
    %232 = vector.broadcast %cst_118 : f32 to vector<8x128xf32>
    %233 = arith.maximumf %231, %232 : vector<8x128xf32>
    %c3_119 = arith.constant 3 : index
    %c0_120 = arith.constant 0 : index
    %c0_121 = arith.constant 0 : index
    %234 = vector.load %arg4[%c3_119, %c0_120, %c0_121] : memref<4x8x33xf32, #tpu.memory_space<vmem>>, vector<1x8x33xf32>
    %235 = vector.shape_cast %234 : vector<1x8x33xf32> to vector<8x33xf32>
    %cst_122 = arith.constant dense<0.000000e+00> : vector<8x128xf32>
    %236 = tpu.matmul %233, %0, %cst_122 {dimension_numbers = #tpu.dot_dimension_numbers<[1], [0], [0], [1], [0, 0, 1, 1], [], []>} : vector<8x128xf32>, vector<128x128xf32>, vector<8x128xf32> -> vector<8x128xf32>
    %cst_123 = arith.constant dense<0.000000e+00> : vector<8x128xf32>
    %237 = tpu.matmul %236, %0, %cst_123 {dimension_numbers = #tpu.dot_dimension_numbers<[1], [0], [0], [1], [0, 0, 1, 1], [], []>} : vector<8x128xf32>, vector<128x128xf32>, vector<8x128xf32> -> vector<8x128xf32>
    %cst_124 = arith.constant dense<0.000000e+00> : vector<8x128xf32>
    %238 = tpu.matmul %237, %0, %cst_124 {dimension_numbers = #tpu.dot_dimension_numbers<[1], [0], [0], [1], [0, 0, 1, 1], [], []>} : vector<8x128xf32>, vector<128x128xf32>, vector<8x128xf32> -> vector<8x128xf32>
    %239 = tpu.concatenate %233, %236, %237, %238, %1 in 0 : vector<8x128xf32>, vector<8x128xf32>, vector<8x128xf32>, vector<8x128xf32>, vector<1x128xf32> -> vector<33x128xf32>
    %cst_125 = arith.constant dense<0.000000e+00> : vector<8x128xf32>
    %240 = tpu.matmul %235, %239, %cst_125 {dimension_numbers = #tpu.dot_dimension_numbers<[1], [0], [0], [1], [0, 0, 1, 1], [], []>} : vector<8x33xf32>, vector<33x128xf32>, vector<8x128xf32> -> vector<8x128xf32>
    %cst_126 = arith.constant 0.000000e+00 : f32
    %241 = vector.broadcast %cst_126 : f32 to vector<8x128xf32>
    %242 = arith.maximumf %240, %241 : vector<8x128xf32>
    %c3_127 = arith.constant 3 : index
    %c0_128 = arith.constant 0 : index
    %c0_129 = arith.constant 0 : index
    %243 = vector.load %arg5[%c3_127, %c0_128, %c0_129] : memref<4x1x33xf32, #tpu.memory_space<vmem>>, vector<1x1x33xf32>
    %244 = vector.shape_cast %243 : vector<1x1x33xf32> to vector<1x33xf32>
    %cst_130 = arith.constant dense<0.000000e+00> : vector<8x128xf32>
    %245 = tpu.matmul %242, %0, %cst_130 {dimension_numbers = #tpu.dot_dimension_numbers<[1], [0], [0], [1], [0, 0, 1, 1], [], []>} : vector<8x128xf32>, vector<128x128xf32>, vector<8x128xf32> -> vector<8x128xf32>
    %cst_131 = arith.constant dense<0.000000e+00> : vector<8x128xf32>
    %246 = tpu.matmul %245, %0, %cst_131 {dimension_numbers = #tpu.dot_dimension_numbers<[1], [0], [0], [1], [0, 0, 1, 1], [], []>} : vector<8x128xf32>, vector<128x128xf32>, vector<8x128xf32> -> vector<8x128xf32>
    %cst_132 = arith.constant dense<0.000000e+00> : vector<8x128xf32>
    %247 = tpu.matmul %246, %0, %cst_132 {dimension_numbers = #tpu.dot_dimension_numbers<[1], [0], [0], [1], [0, 0, 1, 1], [], []>} : vector<8x128xf32>, vector<128x128xf32>, vector<8x128xf32> -> vector<8x128xf32>
    %248 = tpu.concatenate %242, %245, %246, %247, %1 in 0 : vector<8x128xf32>, vector<8x128xf32>, vector<8x128xf32>, vector<8x128xf32>, vector<1x128xf32> -> vector<33x128xf32>
    %cst_133 = arith.constant dense<0.000000e+00> : vector<1x128xf32>
    %249 = tpu.matmul %244, %248, %cst_133 {dimension_numbers = #tpu.dot_dimension_numbers<[1], [0], [0], [1], [0, 0, 1, 1], [], []>} : vector<1x33xf32>, vector<33x128xf32>, vector<1x128xf32> -> vector<1x128xf32>
    %cst_134 = arith.constant 0.000000e+00 : f32
    %250 = vector.broadcast %cst_134 : f32 to vector<1x128xf32>
    %251 = arith.maximumf %249, %250 : vector<1x128xf32>
    %cst_135 = arith.constant dense<0.000000e+00> : vector<1xf32>
    %252 = vector.multi_reduction <add>, %251, %cst_135 [1] : vector<1x128xf32> to vector<1xf32>
    %253 = vector.shape_cast %252 : vector<1xf32> to vector<1x1xf32>
    %cst_136 = arith.constant 1.280000e+02 : f32
    %254 = vector.broadcast %cst_136 : f32 to vector<1x1xf32>
    %255 = arith.divf %253, %254 : vector<1x1xf32>
    %256 = vector.broadcast %255 : vector<1x1xf32> to vector<1x128xf32>
    %257 = arith.subf %251, %256 : vector<1x128xf32>
    %258 = arith.mulf %257, %257 : vector<1x128xf32>
    %cst_137 = arith.constant dense<0.000000e+00> : vector<1xf32>
    %259 = vector.multi_reduction <add>, %258, %cst_137 [1] : vector<1x128xf32> to vector<1xf32>
    %260 = vector.shape_cast %259 : vector<1xf32> to vector<1x1xf32>
    %cst_138 = arith.constant 1.280000e+02 : f32
    %261 = vector.broadcast %cst_138 : f32 to vector<1x1xf32>
    %262 = arith.divf %260, %261 : vector<1x1xf32>
    %263 = vector.broadcast %255 : vector<1x1xf32> to vector<1x128xf32>
    %264 = arith.subf %251, %263 : vector<1x128xf32>
    %cst_139 = arith.constant 9.99999974E-6 : f32
    %265 = vector.broadcast %cst_139 : f32 to vector<1x1xf32>
    %266 = arith.addf %262, %265 : vector<1x1xf32>
    %267 = math.rsqrt %266 : vector<1x1xf32>
    %268 = vector.broadcast %267 : vector<1x1xf32> to vector<1x128xf32>
    %269 = arith.mulf %264, %268 : vector<1x128xf32>
    %270 = tpu.transpose %269, [1, 0] : vector<1x128xf32> -> vector<128x1xf32>
    %271 = vector.broadcast %270 : vector<128x1xf32> to vector<128x128xf32>
    %272 = vector.broadcast %269 : vector<1x128xf32> to vector<128x128xf32>
    %273 = arith.cmpf ogt, %271, %272 : vector<128x128xf32>
    %274 = arith.extui %273 : vector<128x128xi1> to vector<128x128xi32>
    %275 = arith.sitofp %274 : vector<128x128xi32> to vector<128x128xf32>
    %cst_140 = arith.constant dense<0.000000e+00> : vector<128xf32>
    %276 = vector.multi_reduction <add>, %275, %cst_140 [0] : vector<128x128xf32> to vector<128xf32>
    %277 = vector.shape_cast %276 : vector<128xf32> to vector<1x128xf32>
    %cst_141 = arith.constant 1.400000e+01 : f32
    %278 = vector.broadcast %cst_141 : f32 to vector<1x128xf32>
    %279 = arith.cmpf olt, %277, %278 : vector<1x128xf32>
    %cst_142 = arith.constant 0x7F800000 : f32
    %280 = vector.broadcast %cst_142 : f32 to vector<1x128xf32>
    %281 = arith.select %279, %269, %280 : vector<1x128xi1>, vector<1x128xf32>
    %cst_143 = arith.constant dense<0x7F800000> : vector<1xf32>
    %282 = vector.multi_reduction <minimumf>, %281, %cst_143 [1] : vector<1x128xf32> to vector<1xf32>
    %283 = vector.shape_cast %282 : vector<1xf32> to vector<1x1xf32>
    %284 = math.absf %283 : vector<1x1xf32>
    %cst_144 = arith.constant 1.000000e+00 : f32
    %cst_145 = arith.constant -1.000000e+00 : f32
    %285 = vector.broadcast %cst_144 : f32 to vector<1x128xf32>
    %286 = vector.broadcast %cst_145 : f32 to vector<1x128xf32>
    %287 = arith.select %279, %285, %286 : vector<1x128xi1>, vector<1x128xf32>
    %288 = vector.broadcast %284 : vector<1x1xf32> to vector<1x128xf32>
    %289 = arith.subf %269, %288 : vector<1x128xf32>
    %cst_146 = arith.constant 1.000000e-01 : f32
    %290 = vector.broadcast %cst_146 : f32 to vector<1x128xf32>
    %291 = arith.mulf %287, %290 : vector<1x128xf32>
    %292 = arith.addf %289, %291 : vector<1x128xf32>
    %293 = arith.negf %292 : vector<1x128xf32>
    %294 = math.exp %293 : vector<1x128xf32>
    %cst_147 = arith.constant 1.000000e+00 : f32
    %295 = vector.broadcast %cst_147 : f32 to vector<1x128xf32>
    %296 = arith.addf %295, %294 : vector<1x128xf32>
    %297 = arith.divf %295, %296 : vector<1x128xf32>
    %c0_148 = arith.constant 0 : index
    %c0_149 = arith.constant 0 : index
    %298 = vector.load %arg6[%c0_148, %c0_149] : memref<1x128xf32, #tpu.memory_space<vmem>>, vector<1x128xf32>
    tpu.vector_store %arg6[%c0_148, %c0_149], %297 {strides = array<i32>} : memref<1x128xf32, #tpu.memory_space<vmem>>, vector<1x128xf32>,
    return
  }
  func.func @transform_0(%arg0: i32) -> (i32, i32) {
    %c0_i32 = arith.constant 0 : i32
    %c0_i32_0 = arith.constant 0 : i32
    %c0_i32_1 = arith.constant 0 : i32
    return %c0_i32, %c0_i32_0 : i32, i32
  }
  func.func @transform_1(%arg0: i32) -> (i32, i32) {
    %c0_i32 = arith.constant 0 : i32
    %c0_i32_0 = arith.constant 0 : i32
    %c0_i32_1 = arith.constant 0 : i32
    return %c0_i32, %c0_i32_0 : i32, i32
  }
  func.func @transform_2(%arg0: i32) -> (i32, i32, i32) {
    %c0_i32 = arith.constant 0 : i32
    %c0_i32_0 = arith.constant 0 : i32
    %c0_i32_1 = arith.constant 0 : i32
    %c0_i32_2 = arith.constant 0 : i32
    return %c0_i32, %c0_i32_0, %c0_i32_1 : i32, i32, i32
  }
  func.func @transform_3(%arg0: i32) -> (i32, i32, i32) {
    %c0_i32 = arith.constant 0 : i32
    %c0_i32_0 = arith.constant 0 : i32
    %c0_i32_1 = arith.constant 0 : i32
    %c0_i32_2 = arith.constant 0 : i32
    return %c0_i32, %c0_i32_0, %c0_i32_1 : i32, i32, i32
  }
  func.func @transform_4(%arg0: i32) -> (i32, i32, i32) {
    %c0_i32 = arith.constant 0 : i32
    %c0_i32_0 = arith.constant 0 : i32
    %c0_i32_1 = arith.constant 0 : i32
    %c0_i32_2 = arith.constant 0 : i32
    return %c0_i32, %c0_i32_0, %c0_i32_1 : i32, i32, i32
  }
  func.func @transform_5(%arg0: i32) -> (i32, i32) {
    %c0_i32 = arith.constant 0 : i32
    %c0_i32_0 = arith.constant 0 : i32
    %c0_i32_1 = arith.constant 0 : i32
    return %c0_i32, %c0_i32_0 : i32, i32
  }
}

</mosaic_0001>

<llo_original>
// kernel: tpu_custom_call.1
$region0: #{tpu_custom_call.1}
  #allocation0 [shape = 'u32[]', space=smem, size = 0x4, offset = 0x4, fixed_abs, tag = 'smem constant byte address 0x4 - core index']
  #allocation1 [shape = 'u32[72,128]{1,0:T(1,128)}', space=vmem, size = 0x9000, scoped, tag = 'internal scratch']
  %s0 = inlined_call_operand.hbm [shape: f32[128,128], index: 0, kind: input, shape index: {}]
  %s1 = inlined_call_operand.hbm [shape: f32[2,128], index: 1, kind: input, shape index: {}]
  %s2 = inlined_call_operand.hbm [shape: f32[4,8,9], index: 2, kind: input, shape index: {}]
  %s3 = inlined_call_operand.hbm [shape: f32[4,8,33], index: 3, kind: input, shape index: {}]
  %s4 = inlined_call_operand.hbm [shape: f32[4,1,33], index: 4, kind: input, shape index: {}]
  %s5 = inlined_call_operand.hbm [shape: f32[1,128], index: 5, kind: output, shape index: {}]
  %s6 = sld [smem:[#allocation0]]
  $region50: #{tpu_custom_call.1} parent=0
    _
  %s8 = ssub.s32 1, %s6
  %s9 = scalar_select 0, %s8, %s6
  $region1: #{tpu_custom_call.1} parent=0
    #allocation2 [shape = 'u8[65536]{0}', space=vmem, size = 0x10000, scoped, tag = 'input window, operand 0, single buffered']
    #allocation3 [shape = 's32[1]{0}', space=sflag, size = 0x4, scoped, tag = 'scoped memory for tpu_custom_call.1']
    #allocation4 [shape = 's32[1]{0}', space=sflag, size = 0x4, scoped, tag = 'scoped memory for tpu_custom_call.1']
    #allocation5 [shape = 'u8[1024]{0}', space=vmem, size = 0x400, scoped, tag = 'input window, operand 1, single buffered']
    #allocation6 [shape = 's32[1]{0}', space=sflag, size = 0x4, scoped, tag = 'scoped memory for tpu_custom_call.1']
    #allocation7 [shape = 'u8[16384]{0}', space=vmem, size = 0x4000, scoped, tag = 'input window, operand 2, single buffered']
    #allocation8 [shape = 'u8[16384]{0}', space=vmem, size = 0x4000, scoped, tag = 'input window, operand 3, single buffered']
    #allocation9 [shape = 's32[1]{0}', space=sflag, size = 0x4, scoped, tag = 'scoped memory for tpu_custom_call.1']
    #allocation10 [shape = 'u8[2048]{0}', space=vmem, size = 0x800, scoped, tag = 'input window, operand 4, single buffered']
    #allocation11 [shape = 'u8[512]{0}', space=vmem, size = 0x400, scoped, tag = 'output window, operand 0, single buffered']
    %10 = vsyncpa [#allocation3], 0
    %11 = vsyncpa [#allocation6], 0
    %12 = vsyncpa [#allocation9], 0
    %13 = vsyncpa [#allocation4], 0
    // Predicated region
    $region2: #{tpu_custom_call.1} parent=1 // pred_check
      _
    $region3: #{tpu_custom_call.1} parent=1 // pred_check_branch
      %15 = sbr.rel (0) target = $region5
    $region4: #{tpu_custom_call.1} parent=1 // pred_region
      %17 = vsyncadd [#allocation3], 0
      %s18 = sshll.u32 %s0, 4
      %s19 = int_to_ptr.hbm [resolvable:$true] %s18
      %s20 = sshll.u32 [#allocation2], 4
      %s21 = int_to_ptr.vmem [resolvable:$true] %s20
      %26 = dma.hbm_to_vmem [thread:$0]  %s19, 2048, %s21, [#allocation3], 128, 128, 8
    $region5: #{tpu_custom_call.1} parent=1 // pred_fallthru
      _
    // Predicated region
    $region6: #{tpu_custom_call.1} parent=1 // pred_check
      _
    $region7: #{tpu_custom_call.1} parent=1 // pred_check_branch
      %28 = sbr.rel (0) target = $region9
    $region8: #{tpu_custom_call.1} parent=1 // pred_region
      %30 = vsyncadd [#allocation6], 0
      %s32 = sshll.u32 %s1, 4
      %s33 = int_to_ptr.hbm [resolvable:$true] %s32
      %s34 = sshll.u32 [#allocation5], 4
      %s35 = int_to_ptr.vmem [resolvable:$true] %s34
      %37 = dma.hbm_to_vmem [thread:$0]  %s33, 32, %s35, [#allocation6]
    $region9: #{tpu_custom_call.1} parent=1 // pred_fallthru
      _
    // Predicated region
    $region10: #{tpu_custom_call.1} parent=1 // pred_check
      _
    $region11: #{tpu_custom_call.1} parent=1 // pred_check_branch
      %39 = sbr.rel (0) target = $region13
    $region12: #{tpu_custom_call.1} parent=1 // pred_region
      %41 = vsyncadd [#allocation6], 0
      %s42 = sshll.u32 %s2, 4
      %s43 = int_to_ptr.hbm [resolvable:$true] %s42
      %s44 = sshll.u32 [#allocation7], 4
      %s45 = int_to_ptr.vmem [resolvable:$true] %s44
      %50 = dma.hbm_to_vmem [thread:$0]  %s43, 512, %s45, [#allocation6], 128, 128, 8
    $region13: #{tpu_custom_call.1} parent=1 // pred_fallthru
      _
    // Predicated region
    $region14: #{tpu_custom_call.1} parent=1 // pred_check
      _
    $region15: #{tpu_custom_call.1} parent=1 // pred_check_branch
      %52 = sbr.rel (0) target = $region17
    $region16: #{tpu_custom_call.1} parent=1 // pred_region
      %54 = vsyncadd [#allocation9], 0
      %s55 = sshll.u32 %s3, 4
      %s56 = int_to_ptr.hbm [resolvable:$true] %s55
      %s57 = sshll.u32 [#allocation8], 4
      %s58 = int_to_ptr.vmem [resolvable:$true] %s57
      %63 = dma.hbm_to_vmem [thread:$0]  %s56, 512, %s58, [#allocation9], 128, 128, 8
    $region17: #{tpu_custom_call.1} parent=1 // pred_fallthru
      _
    // Predicated region
    $region18: #{tpu_custom_call.1} parent=1 // pred_check
      _
    $region19: #{tpu_custom_call.1} parent=1 // pred_check_branch
      %65 = sbr.rel (0) target = $region21
    $region20: #{tpu_custom_call.1} parent=1 // pred_region
      %67 = vsyncadd [#allocation9], 0
      %s68 = sshll.u32 %s4, 4
      %s69 = int_to_ptr.hbm [resolvable:$true] %s68
      %s70 = sshll.u32 [#allocation10], 4
      %s71 = int_to_ptr.vmem [resolvable:$true] %s70
      %76 = dma.hbm_to_vmem [thread:$0]  %s69, 64, %s71, [#allocation9], 16, 16, 1
    $region21: #{tpu_custom_call.1} parent=1 // pred_fallthru
      _
    // Predicated region
    $region22: #{tpu_custom_call.1} parent=1 // pred_check
      _
    $region23: #{tpu_custom_call.1} parent=1 // pred_check_branch
      %78 = sbr.rel (0) target = $region25
    $region24: #{tpu_custom_call.1} parent=1 // pred_region
      %80 = dma.done [#allocation3], 2048
    $region25: #{tpu_custom_call.1} parent=1 // pred_fallthru
      _
    // Predicated region
    $region26: #{tpu_custom_call.1} parent=1 // pred_check
      _
    $region27: #{tpu_custom_call.1} parent=1 // pred_check_branch
      %82 = sbr.rel (0) target = $region29
    $region28: #{tpu_custom_call.1} parent=1 // pred_region
      %84 = dma.done [#allocation6], 32
    $region29: #{tpu_custom_call.1} parent=1 // pred_fallthru
      _
    // Predicated region
    $region30: #{tpu_custom_call.1} parent=1 // pred_check
      _
    $region31: #{tpu_custom_call.1} parent=1 // pred_check_branch
      %86 = sbr.rel (0) target = $region33
    $region32: #{tpu_custom_call.1} parent=1 // pred_region
      %88 = dma.done [#allocation6], 512
    $region33: #{tpu_custom_call.1} parent=1 // pred_fallthru
      _
    // Predicated region
    $region34: #{tpu_custom_call.1} parent=1 // pred_check
      _
    $region35: #{tpu_custom_call.1} parent=1 // pred_check_branch
      %90 = sbr.rel (0) target = $region37
    $region36: #{tpu_custom_call.1} parent=1 // pred_region
      %92 = dma.done [#allocation9], 512
    $region37: #{tpu_custom_call.1} parent=1 // pred_fallthru
      _
    // Predicated region
    $region38: #{tpu_custom_call.1} parent=1 // pred_check
      _
    $region39: #{tpu_custom_call.1} parent=1 // pred_check_branch
      %94 = sbr.rel (0) target = $region41
    $region40: #{tpu_custom_call.1} parent=1 // pred_region
      %96 = dma.done [#allocation9], 64
    $region41: #{tpu_custom_call.1} parent=1 // pred_fallthru
      _
    %v97 = vld [vmem:[#allocation2] sm:$0xff]
    %v98 = vld [vmem:[#allocation2 + $0x8] sm:$0xff]
    %v99 = vld [vmem:[#allocation2 + $0x10] sm:$0xff]
    %v100 = vld [vmem:[#allocation2 + $0x18] sm:$0xff]
    %v101 = vld [vmem:[#allocation2 + $0x20] sm:$0xff]
    %v102 = vld [vmem:[#allocation2 + $0x28] sm:$0xff]
    %v103 = vld [vmem:[#allocation2 + $0x30] sm:$0xff]
    %v104 = vld [vmem:[#allocation2 + $0x38] sm:$0xff]
    %v105 = vld [vmem:[#allocation2 + $0x40] sm:$0xff]
    %v106 = vld [vmem:[#allocation2 + $0x48] sm:$0xff]
    %v107 = vld [vmem:[#allocation2 + $0x50] sm:$0xff]
    %v108 = vld [vmem:[#allocation2 + $0x58] sm:$0xff]
    %v109 = vld [vmem:[#allocation2 + $0x60] sm:$0xff]
    %v110 = vld [vmem:[#allocation2 + $0x68] sm:$0xff]
    %v111 = vld [vmem:[#allocation2 + $0x70] sm:$0xff]
    %v112 = vld [vmem:[#allocation2 + $0x78] sm:$0xff]
    %v113 = vld [vmem:[#allocation5] sm:$0x3]
    %v114 = vld [vmem:[#allocation7] sm:$0xff]
    %115 = vmatpush.msra.mxu0 %v112
    %116 = vmatpush.msra.mxu0 %v111
    %117 = vmatpush.msra.mxu0 %v110
    %118 = vmatpush.msra.mxu0 %v109
    %119 = vmatpush.msra.mxu0 %v108
    %120 = vmatpush.msra.mxu0 %v107
    %121 = vmatpush.msra.mxu0 %v106
    %122 = vmatpush.msra.mxu0 %v105
    %123 = vmatpush.msra.mxu0 %v104
    %124 = vmatpush.msra.mxu0 %v103
    %125 = vmatpush.msra.mxu0 %v102
    %126 = vmatpush.msra.mxu0 %v101
    %127 = vmatpush.msra.mxu0 %v100
    %128 = vmatpush.msra.mxu0 %v99
    %129 = vmatpush.msra.mxu0 %v98
    %130 = vmatpush.msra.mxu0 %v97
    %131 = vmatmul.f32.gmra.mxu0 %v113
    %v132 = vpop.f32.mrf.mxu0
    %v133 = vadd.f32 0.0, %v132
    %134 = vdwg.mxu0
    %135 = vmatpush.msra.mxu0 %v112
    %136 = vmatpush.msra.mxu0 %v111
    %137 = vmatpush.msra.mxu0 %v110
    %138 = vmatpush.msra.mxu0 %v109
    %139 = vmatpush.msra.mxu0 %v108
    %140 = vmatpush.msra.mxu0 %v107
    %141 = vmatpush.msra.mxu0 %v106
    %142 = vmatpush.msra.mxu0 %v105
    %143 = vmatpush.msra.mxu0 %v104
    %144 = vmatpush.msra.mxu0 %v103
    %145 = vmatpush.msra.mxu0 %v102
    %146 = vmatpush.msra.mxu0 %v101
    %147 = vmatpush.msra.mxu0 %v100
    %148 = vmatpush.msra.mxu0 %v99
    %149 = vmatpush.msra.mxu0 %v98
    %150 = vmatpush.msra.mxu0 %v97
    %151 = vmatmul.f32.gmra.mxu0 %v133
    %v152 = vpop.f32.mrf.mxu0
    %v153 = vadd.f32 0.0, %v152
    %154 = vdwg.mxu0
    %155 = vmatpush.msra.mxu0 %v112
    %156 = vmatpush.msra.mxu0 %v111
    %157 = vmatpush.msra.mxu0 %v110
    %158 = vmatpush.msra.mxu0 %v109
    %159 = vmatpush.msra.mxu0 %v108
    %160 = vmatpush.msra.mxu0 %v107
    %161 = vmatpush.msra.mxu0 %v106
    %162 = vmatpush.msra.mxu0 %v105
    %163 = vmatpush.msra.mxu0 %v104
    %164 = vmatpush.msra.mxu0 %v103
    %165 = vmatpush.msra.mxu0 %v102
    %166 = vmatpush.msra.mxu0 %v101
    %167 = vmatpush.msra.mxu0 %v100
    %168 = vmatpush.msra.mxu0 %v99
    %169 = vmatpush.msra.mxu0 %v98
    %170 = vmatpush.msra.mxu0 %v97
    %171 = vmatmul.f32.gmra.mxu0 %v153
    %v172 = vpop.f32.mrf.mxu0
    %v173 = vadd.f32 0.0, %v172
    %174 = vdwg.mxu0
    %v176 = vrot.slane %v133, 6
    %v179 = vrot.slane %v153, 4
    %v182 = vrot.slane %v173, 2
    %vm184 = vcmask 1041408
    %v185 = vsel %vm184, %v113, %v176
    %vm186 = vcmask 1043456
    %v187 = vsel %vm186, %v185, %v179
    %vm188 = vcmask 1045504
    %v189 = vsel %vm188, %v187, %v182
    %vm190 = vcmask 72704
    %v192 = vsel %vm190, %v114, 0
    %vm194 = vcmask 1040384
    %v196 = vsel %vm194, 1.0, 0
    %198 = vmatpush.msra.mxu0 0.0
    %199 = vmatpush.msra.mxu0 0.0
    %200 = vmatpush.msra.mxu0 0.0
    %201 = vmatpush.msra.mxu0 0.0
    %202 = vmatpush.msra.mxu0 0.0
    %203 = vmatpush.msra.mxu0 0.0
    %204 = vmatpush.msra.mxu0 0.0
    %205 = vmatpush.msra.mxu0 0.0
    %206 = vmatpush.msra.mxu0 0.0
    %207 = vmatpush.msra.mxu0 0.0
    %208 = vmatpush.msra.mxu0 0.0
    %209 = vmatpush.msra.mxu0 0.0
    %210 = vmatpush.msra.mxu0 0.0
    %211 = vmatpush.msra.mxu0 0.0
    %212 = vmatpush.msra.mxu0 %v196
    %213 = vmatpush.msra.mxu0 %v189
    %214 = vmatmul.f32.gmra.mxu0 %v192
    %v215 = vpop.f32.mrf.mxu0
    %v216 = vadd.f32 0.0, %v215
    %217 = vdwg.mxu0
    %v218 = vmax.f32 %v216, 0.0
    %v219 = vld [vmem:[#allocation8] sm:$0xff]
    %220 = vmatpush.msra.mxu0 %v112
    %221 = vmatpush.msra.mxu0 %v111
    %222 = vmatpush.msra.mxu0 %v110
    %223 = vmatpush.msra.mxu0 %v109
    %224 = vmatpush.msra.mxu0 %v108
    %225 = vmatpush.msra.mxu0 %v107
    %226 = vmatpush.msra.mxu0 %v106
    %227 = vmatpush.msra.mxu0 %v105
    %228 = vmatpush.msra.mxu0 %v104
    %229 = vmatpush.msra.mxu0 %v103
    %230 = vmatpush.msra.mxu0 %v102
    %231 = vmatpush.msra.mxu0 %v101
    %232 = vmatpush.msra.mxu0 %v100
    %233 = vmatpush.msra.mxu0 %v99
    %234 = vmatpush.msra.mxu0 %v98
    %235 = vmatpush.msra.mxu0 %v97
    %236 = vmatmul.f32.gmra.mxu0 %v218
    %v237 = vpop.f32.mrf.mxu0
    %v238 = vadd.f32 0.0, %v237
    %239 = vdwg.mxu0
    %240 = vmatpush.msra.mxu0 %v112
    %241 = vmatpush.msra.mxu0 %v111
    %242 = vmatpush.msra.mxu0 %v110
    %243 = vmatpush.msra.mxu0 %v109
    %244 = vmatpush.msra.mxu0 %v108
    %245 = vmatpush.msra.mxu0 %v107
    %246 = vmatpush.msra.mxu0 %v106
    %247 = vmatpush.msra.mxu0 %v105
    %248 = vmatpush.msra.mxu0 %v104
    %249 = vmatpush.msra.mxu0 %v103
    %250 = vmatpush.msra.mxu0 %v102
    %251 = vmatpush.msra.mxu0 %v101
    %252 = vmatpush.msra.mxu0 %v100
    %253 = vmatpush.msra.mxu0 %v99
    %254 = vmatpush.msra.mxu0 %v98
    %255 = vmatpush.msra.mxu0 %v97
    %256 = vmatmul.f32.gmra.mxu0 %v238
    %v257 = vpop.f32.mrf.mxu0
    %v258 = vadd.f32 0.0, %v257
    %259 = vdwg.mxu0
    %260 = vmatpush.msra.mxu0 %v112
    %261 = vmatpush.msra.mxu0 %v111
    %262 = vmatpush.msra.mxu0 %v110
    %263 = vmatpush.msra.mxu0 %v109
    %264 = vmatpush.msra.mxu0 %v108
    %265 = vmatpush.msra.mxu0 %v107
    %266 = vmatpush.msra.mxu0 %v106
    %267 = vmatpush.msra.mxu0 %v105
    %268 = vmatpush.msra.mxu0 %v104
    %269 = vmatpush.msra.mxu0 %v103
    %270 = vmatpush.msra.mxu0 %v102
    %271 = vmatpush.msra.mxu0 %v101
    %272 = vmatpush.msra.mxu0 %v100
    %273 = vmatpush.msra.mxu0 %v99
    %274 = vmatpush.msra.mxu0 %v98
    %275 = vmatpush.msra.mxu0 %v97
    %276 = vmatmul.f32.gmra.mxu0 %v258
    %v277 = vpop.f32.mrf.mxu0
    %v278 = vadd.f32 0.0, %v277
    %279 = vdwg.mxu0
    %vm280 = vcmask 269312
    %v282 = vsel %vm280, %v219, 0
    %284 = vmatpush.msra.mxu0 0.0
    %285 = vmatpush.msra.mxu0 0.0
    %286 = vmatpush.msra.mxu0 0.0
    %287 = vmatpush.msra.mxu0 0.0
    %288 = vmatpush.msra.mxu0 0.0
    %289 = vmatpush.msra.mxu0 0.0
    %290 = vmatpush.msra.mxu0 0.0
    %291 = vmatpush.msra.mxu0 0.0
    %292 = vmatpush.msra.mxu0 0.0
    %293 = vmatpush.msra.mxu0 0.0
    %294 = vmatpush.msra.mxu0 0.0
    %295 = vmatpush.msra.mxu0 %v196
    %296 = vmatpush.msra.mxu0 %v278
    %297 = vmatpush.msra.mxu0 %v258
    %298 = vmatpush.msra.mxu0 %v238
    %299 = vmatpush.msra.mxu0 %v218
    %300 = vmatmul.f32.gmra.mxu0 %v282
    %v301 = vpop.f32.mrf.mxu0
    %v302 = vadd.f32 0.0, %v301
    %303 = vdwg.mxu0
    %v304 = vmax.f32 %v302, 0.0
    %v305 = vld [vmem:[#allocation10] sm:$0x1]
    %306 = vmatpush.msra.mxu0 %v112
    %307 = vmatpush.msra.mxu0 %v111
    %308 = vmatpush.msra.mxu0 %v110
    %309 = vmatpush.msra.mxu0 %v109
    %310 = vmatpush.msra.mxu0 %v108
    %311 = vmatpush.msra.mxu0 %v107
    %312 = vmatpush.msra.mxu0 %v106
    %313 = vmatpush.msra.mxu0 %v105
    %314 = vmatpush.msra.mxu0 %v104
    %315 = vmatpush.msra.mxu0 %v103
    %316 = vmatpush.msra.mxu0 %v102
    %317 = vmatpush.msra.mxu0 %v101
    %318 = vmatpush.msra.mxu0 %v100
    %319 = vmatpush.msra.mxu0 %v99
    %320 = vmatpush.msra.mxu0 %v98
    %321 = vmatpush.msra.mxu0 %v97
    %322 = vmatmul.f32.gmra.mxu0 %v304
    %v323 = vpop.f32.mrf.mxu0
    %v324 = vadd.f32 0.0, %v323
    %325 = vdwg.mxu0
    %326 = vmatpush.msra.mxu0 %v112
    %327 = vmatpush.msra.mxu0 %v111
    %328 = vmatpush.msra.mxu0 %v110
    %329 = vmatpush.msra.mxu0 %v109
    %330 = vmatpush.msra.mxu0 %v108
    %331 = vmatpush.msra.mxu0 %v107
    %332 = vmatpush.msra.mxu0 %v106
    %333 = vmatpush.msra.mxu0 %v105
    %334 = vmatpush.msra.mxu0 %v104
    %335 = vmatpush.msra.mxu0 %v103
    %336 = vmatpush.msra.mxu0 %v102
    %337 = vmatpush.msra.mxu0 %v101
    %338 = vmatpush.msra.mxu0 %v100
    %339 = vmatpush.msra.mxu0 %v99
    %340 = vmatpush.msra.mxu0 %v98
    %341 = vmatpush.msra.mxu0 %v97
    %342 = vmatmul.f32.gmra.mxu0 %v324
    %v343 = vpop.f32.mrf.mxu0
    %v344 = vadd.f32 0.0, %v343
    %345 = vdwg.mxu0
    %346 = vmatpush.msra.mxu0 %v112
    %347 = vmatpush.msra.mxu0 %v111
    %348 = vmatpush.msra.mxu0 %v110
    %349 = vmatpush.msra.mxu0 %v109
    %350 = vmatpush.msra.mxu0 %v108
    %351 = vmatpush.msra.mxu0 %v107
    %352 = vmatpush.msra.mxu0 %v106
    %353 = vmatpush.msra.mxu0 %v105
    %354 = vmatpush.msra.mxu0 %v104
    %355 = vmatpush.msra.mxu0 %v103
    %356 = vmatpush.msra.mxu0 %v102
    %357 = vmatpush.msra.mxu0 %v101
    %358 = vmatpush.msra.mxu0 %v100
    %359 = vmatpush.msra.mxu0 %v99
    %360 = vmatpush.msra.mxu0 %v98
    %361 = vmatpush.msra.mxu0 %v97
    %362 = vmatmul.f32.gmra.mxu0 %v344
    %v363 = vpop.f32.mrf.mxu0
    %v364 = vadd.f32 0.0, %v363
    %365 = vdwg.mxu0
    %v367 = vsel %vm280, %v305, 0
    %369 = vmatpush.msra.mxu0 0.0
    %370 = vmatpush.msra.mxu0 0.0
    %371 = vmatpush.msra.mxu0 0.0
    %372 = vmatpush.msra.mxu0 0.0
    %373 = vmatpush.msra.mxu0 0.0
    %374 = vmatpush.msra.mxu0 0.0
    %375 = vmatpush.msra.mxu0 0.0
    %376 = vmatpush.msra.mxu0 0.0
    %377 = vmatpush.msra.mxu0 0.0
    %378 = vmatpush.msra.mxu0 0.0
    %379 = vmatpush.msra.mxu0 0.0
    %380 = vmatpush.msra.mxu0 %v196
    %381 = vmatpush.msra.mxu0 %v364
    %382 = vmatpush.msra.mxu0 %v344
    %383 = vmatpush.msra.mxu0 %v324
    %384 = vmatpush.msra.mxu0 %v304
    %385 = vmatmul.f32.gmra.mxu0 %v367
    %v386 = vpop.f32.mrf.mxu0
    %v387 = vadd.f32 0.0, %v386
    %388 = vdwg.mxu0
    %v389 = vmax.f32 %v387, 0.0
    %v390 = vsel %vm194, %v389, 0.0
    %391 = vadd.xlane.f32.xlu0 %v390
    %v392 = vpop.xlane.xlu0 %391
    %v393 = vrcp.pop 128.0
    %v394 = vmul.f32 128.0, %v393
    %v395 = vsub.f32 1.0, %v394
    %v396 = vmul.f32 %v393, %v395
    %v397 = vadd.f32 %v393, %v396
    %vm398 = vweird.f32 %v393
    %v399 = vsel %vm398, %v393, %v397
    %v400 = vmul.f32 %v392, %v399
    %v401 = vsub.f32 %v389, %v400
    %v402 = vmul.f32 %v401, %v401
    %v403 = vsel %vm194, %v402, 0.0
    %404 = vadd.xlane.f32.xlu0 %v403
    %v405 = vpop.xlane.xlu0 %404
    %v406 = vmul.f32 %v405, %v399
    %v407 = vadd.f32 %v406, 1e-05
    %v408 = vrsqrt.pop %v407
    %v409 = vmul.f32 %v408, %v407
    %v410 = vmul.f32 %v409, %v408
    %v411 = vmul.f32 0.5, %v410
    %v412 = vsub.f32 1.5, %v411
    %v413 = vmul.f32 %v408, %v412
    %vm414 = vweird.f32 %v407
    %vm415 = vweird.f32 %v408
    %vm416 = vmor %vm414, %vm415
    %v417 = vsel %vm416, %v408, %v413
    %v418 = vmul.f32 %v401, %v417
    %419 = vxpose.xlu0.b32.start [1/16] %v418, 128
    %420 = vxpose.xlu0.b32.cont [2/16] 0.0, 128
    %421 = vxpose.xlu0.b32.cont [3/16] 0.0, 128
    %422 = vxpose.xlu0.b32.cont [4/16] 0.0, 128
    %423 = vxpose.xlu0.b32.cont [5/16] 0.0, 128
    %424 = vxpose.xlu0.b32.cont [6/16] 0.0, 128
    %425 = vxpose.xlu0.b32.cont [7/16] 0.0, 128
    %426 = vxpose.xlu0.b32.cont [8/16] 0.0, 128
    %427 = vxpose.xlu0.b32.cont [9/16] 0.0, 128
    %428 = vxpose.xlu0.b32.cont [10/16] 0.0, 128
    %429 = vxpose.xlu0.b32.cont [11/16] 0.0, 128
    %430 = vxpose.xlu0.b32.cont [12/16] 0.0, 128
    %431 = vxpose.xlu0.b32.cont [13/16] 0.0, 128
    %432 = vxpose.xlu0.b32.cont [14/16] 0.0, 128
    %433 = vxpose.xlu0.b32.cont [15/16] 0.0, 128
    %434 = vxpose.xlu0.b32.end [16/16] 0.0, 128
    %v435 = vpop.trf.xlu0
    %v436 = vpop.trf.xlu0
    %v437 = vpop.trf.xlu0
    %v438 = vpop.trf.xlu0
    %v439 = vpop.trf.xlu0
    %v440 = vpop.trf.xlu0
    %v441 = vpop.trf.xlu0
    %v442 = vpop.trf.xlu0
    %v443 = vpop.trf.xlu0
    %v444 = vpop.trf.xlu0
    %v445 = vpop.trf.xlu0
    %v446 = vpop.trf.xlu0
    %v447 = vpop.trf.xlu0
    %v448 = vpop.trf.xlu0
    %v449 = vpop.trf.xlu0
    %v450 = vpop.trf.xlu0
    %452 = vset.pattern.permute.xlu0 0
    %453 = vperm.xlu0 %452, %v435
    %v454 = vpop.permute.xlu0 %453
    %457 = vset.pattern.permute.xlu0 0
    %458 = vperm.xlu0 %457, %v436
    %v459 = vpop.permute.xlu0 %458
    %462 = vset.pattern.permute.xlu0 0
    %463 = vperm.xlu0 %462, %v437
    %v464 = vpop.permute.xlu0 %463
    %467 = vset.pattern.permute.xlu0 0
    %468 = vperm.xlu0 %467, %v438
    %v469 = vpop.permute.xlu0 %468
    %472 = vset.pattern.permute.xlu0 0
    %473 = vperm.xlu0 %472, %v439
    %v474 = vpop.permute.xlu0 %473
    %477 = vset.pattern.permute.xlu0 0
    %478 = vperm.xlu0 %477, %v440
    %v479 = vpop.permute.xlu0 %478
    %482 = vset.pattern.permute.xlu0 0
    %483 = vperm.xlu0 %482, %v441
    %v484 = vpop.permute.xlu0 %483
    %487 = vset.pattern.permute.xlu0 0
    %488 = vperm.xlu0 %487, %v442
    %v489 = vpop.permute.xlu0 %488
    %492 = vset.pattern.permute.xlu0 0
    %493 = vperm.xlu0 %492, %v443
    %v494 = vpop.permute.xlu0 %493
    %497 = vset.pattern.permute.xlu0 0
    %498 = vperm.xlu0 %497, %v444
    %v499 = vpop.permute.xlu0 %498
    %502 = vset.pattern.permute.xlu0 0
    %503 = vperm.xlu0 %502, %v445
    %v504 = vpop.permute.xlu0 %503
    %507 = vset.pattern.permute.xlu0 0
    %508 = vperm.xlu0 %507, %v446
    %v509 = vpop.permute.xlu0 %508
    %512 = vset.pattern.permute.xlu0 0
    %513 = vperm.xlu0 %512, %v447
    %v514 = vpop.permute.xlu0 %513
    %517 = vset.pattern.permute.xlu0 0
    %518 = vperm.xlu0 %517, %v448
    %v519 = vpop.permute.xlu0 %518
    %522 = vset.pattern.permute.xlu0 0
    %523 = vperm.xlu0 %522, %v449
    %v524 = vpop.permute.xlu0 %523
    %527 = vset.pattern.permute.xlu0 0
    %528 = vperm.xlu0 %527, %v450
    %v529 = vpop.permute.xlu0 %528
    %v531 = vperm.slane %v418, 0
    %vm532 = vcmp.gt.f32.partialorder %v454, %v531
    %vm533 = vcmp.gt.f32.partialorder %v459, %v531
    %vm534 = vcmp.gt.f32.partialorder %v464, %v531
    %vm535 = vcmp.gt.f32.partialorder %v469, %v531
    %vm536 = vcmp.gt.f32.partialorder %v474, %v531
    %vm537 = vcmp.gt.f32.partialorder %v479, %v531
    %vm538 = vcmp.gt.f32.partialorder %v484, %v531
    %vm539 = vcmp.gt.f32.partialorder %v489, %v531
    %vm540 = vcmp.gt.f32.partialorder %v494, %v531
    %vm541 = vcmp.gt.f32.partialorder %v499, %v531
    %vm542 = vcmp.gt.f32.partialorder %v504, %v531
    %vm543 = vcmp.gt.f32.partialorder %v509, %v531
    %vm544 = vcmp.gt.f32.partialorder %v514, %v531
    %vm545 = vcmp.gt.f32.partialorder %v519, %v531
    %vm546 = vcmp.gt.f32.partialorder %v524, %v531
    %vm547 = vcmp.gt.f32.partialorder %v529, %v531
    %v548 = vsel %vm532, 1, 0
    %v549 = vsel %vm533, 1, 0
    %v550 = vsel %vm534, 1, 0
    %v551 = vsel %vm535, 1, 0
    %v552 = vsel %vm536, 1, 0
    %v553 = vsel %vm537, 1, 0
    %v554 = vsel %vm538, 1, 0
    %v555 = vsel %vm539, 1, 0
    %v556 = vsel %vm540, 1, 0
    %v557 = vsel %vm541, 1, 0
    %v558 = vsel %vm542, 1, 0
    %v559 = vsel %vm543, 1, 0
    %v560 = vsel %vm544, 1, 0
    %v561 = vsel %vm545, 1, 0
    %v562 = vsel %vm546, 1, 0
    %v563 = vsel %vm547, 1, 0
    %v564 = vcvt.s32.f32 %v548
    %v565 = vcvt.s32.f32 %v549
    %v566 = vcvt.s32.f32 %v550
    %v567 = vcvt.s32.f32 %v551
    %v568 = vcvt.s32.f32 %v552
    %v569 = vcvt.s32.f32 %v553
    %v570 = vcvt.s32.f32 %v554
    %v571 = vcvt.s32.f32 %v555
    %v572 = vcvt.s32.f32 %v556
    %v573 = vcvt.s32.f32 %v557
    %v574 = vcvt.s32.f32 %v558
    %v575 = vcvt.s32.f32 %v559
    %v576 = vcvt.s32.f32 %v560
    %v577 = vcvt.s32.f32 %v561
    %v578 = vcvt.s32.f32 %v562
    %v579 = vcvt.s32.f32 %v563
    %v580 = vadd.f32 %v564, %v565
    %v581 = vadd.f32 %v580, %v566
    %v582 = vadd.f32 %v581, %v567
    %v583 = vadd.f32 %v582, %v568
    %v584 = vadd.f32 %v583, %v569
    %v585 = vadd.f32 %v584, %v570
    %v586 = vadd.f32 %v585, %v571
    %v587 = vadd.f32 %v586, %v572
    %v588 = vadd.f32 %v587, %v573
    %v589 = vadd.f32 %v588, %v574
    %v590 = vadd.f32 %v589, %v575
    %v591 = vadd.f32 %v590, %v576
    %v592 = vadd.f32 %v591, %v577
    %v593 = vadd.f32 %v592, %v578
    %v594 = vadd.f32 %v593, %v579
    %v595 = vrot.slane %v594, 4
    %v596 = vadd.f32 %v594, %v595
    %v597 = vrot.slane %v596, 2
    %v598 = vadd.f32 %v596, %v597
    %v599 = vrot.slane %v598, 1
    %v600 = vadd.f32 %v598, %v599
    %vm601 = vcmp.lt.f32.partialorder %v600, 14.0
    %v602 = vsel %vm601, %v418, inf
    %v603 = vsel %vm194, %v602, inf
    %604 = vmin.xlane.f32.xlu0 %v603
    %v605 = vpop.xlane.xlu0 %604
    %v606 = vand.u32 2147483647, %v605
    %v607 = vsel %vm601, 1.0, -1.0
    %v608 = vsub.f32 %v418, %v606
    %v609 = vmul.f32 %v607, 0.1
    %v610 = vadd.f32 %v608, %v609
    %v611 = vxor.u32 %v610, 2147483648
    %v612 = vmul.f32 %v611, 1.442695
    %v613 = vpow.pop %v612
    %v614 = vadd.f32 %v613, 1.0
    %v615 = vrcp.pop %v614
    %v616 = vmul.f32 %v614, %v615
    %v617 = vsub.f32 1.0, %v616
    %v618 = vmul.f32 %v615, %v617
    %v619 = vadd.f32 %v615, %v618
    %vm620 = vweird.f32 %v614
    %vm621 = vweird.f32 %v615
    %vm622 = vmor %vm620, %vm621
    %v623 = vsel %vm622, %v615, %v619
    %v624 = vand.u32 2147483647, %v614
    %vm625 = vcmp.eq.f32.partialorder %v624, 8.507059e+37
    %v626 = vand.u32 %v614, 2147483648
    %v627 = vor.u32 1.1754944e-38, %v626
    %v628 = vsel %vm625, %v627, %v623
    %v629 = vmul.f32 1.0, %v628
    %v631 = vrot.slane %v629, 7
    %v633 = vsel %vm194, %v418, %v631
    %s634 = scalar_lea.vmem [#allocation7], 8
    %v635 = vld [vmem:[%s634] sm:$0xff]
    %636 = vmatpush.msra.mxu0 %v112
    %637 = vmatpush.msra.mxu0 %v111
    %638 = vmatpush.msra.mxu0 %v110
    %639 = vmatpush.msra.mxu0 %v109
    %640 = vmatpush.msra.mxu0 %v108
    %641 = vmatpush.msra.mxu0 %v107
    %642 = vmatpush.msra.mxu0 %v106
    %643 = vmatpush.msra.mxu0 %v105
    %644 = vmatpush.msra.mxu0 %v104
    %645 = vmatpush.msra.mxu0 %v103
    %646 = vmatpush.msra.mxu0 %v102
    %647 = vmatpush.msra.mxu0 %v101
    %648 = vmatpush.msra.mxu0 %v100
    %649 = vmatpush.msra.mxu0 %v99
    %650 = vmatpush.msra.mxu0 %v98
    %651 = vmatpush.msra.mxu0 %v97
    %652 = vmatmul.f32.gmra.mxu0 %v633
    %v653 = vpop.f32.mrf.mxu0
    %v654 = vadd.f32 0.0, %v653
    %655 = vdwg.mxu0
    %656 = vmatpush.msra.mxu0 %v112
    %657 = vmatpush.msra.mxu0 %v111
    %658 = vmatpush.msra.mxu0 %v110
    %659 = vmatpush.msra.mxu0 %v109
    %660 = vmatpush.msra.mxu0 %v108
    %661 = vmatpush.msra.mxu0 %v107
    %662 = vmatpush.msra.mxu0 %v106
    %663 = vmatpush.msra.mxu0 %v105
    %664 = vmatpush.msra.mxu0 %v104
    %665 = vmatpush.msra.mxu0 %v103
    %666 = vmatpush.msra.mxu0 %v102
    %667 = vmatpush.msra.mxu0 %v101
    %668 = vmatpush.msra.mxu0 %v100
    %669 = vmatpush.msra.mxu0 %v99
    %670 = vmatpush.msra.mxu0 %v98
    %671 = vmatpush.msra.mxu0 %v97
    %672 = vmatmul.f32.gmra.mxu0 %v654
    %v673 = vpop.f32.mrf.mxu0
    %v674 = vadd.f32 0.0, %v673
    %675 = vdwg.mxu0
    %676 = vmatpush.msra.mxu0 %v112
    %677 = vmatpush.msra.mxu0 %v111
    %678 = vmatpush.msra.mxu0 %v110
    %679 = vmatpush.msra.mxu0 %v109
    %680 = vmatpush.msra.mxu0 %v108
    %681 = vmatpush.msra.mxu0 %v107
    %682 = vmatpush.msra.mxu0 %v106
    %683 = vmatpush.msra.mxu0 %v105
    %684 = vmatpush.msra.mxu0 %v104
    %685 = vmatpush.msra.mxu0 %v103
    %686 = vmatpush.msra.mxu0 %v102
    %687 = vmatpush.msra.mxu0 %v101
    %688 = vmatpush.msra.mxu0 %v100
    %689 = vmatpush.msra.mxu0 %v99
    %690 = vmatpush.msra.mxu0 %v98
    %691 = vmatpush.msra.mxu0 %v97
    %692 = vmatmul.f32.gmra.mxu0 %v674
    %v693 = vpop.f32.mrf.mxu0
    %v694 = vadd.f32 0.0, %v693
    %695 = vdwg.mxu0
    %v697 = vrot.slane %v654, 6
    %v700 = vrot.slane %v674, 4
    %v703 = vrot.slane %v694, 2
    %v705 = vsel %vm184, %v633, %v697
    %v706 = vsel %vm186, %v705, %v700
    %v707 = vsel %vm188, %v706, %v703
    %v709 = vsel %vm190, %v635, 0
    %711 = vmatpush.msra.mxu0 0.0
    %712 = vmatpush.msra.mxu0 0.0
    %713 = vmatpush.msra.mxu0 0.0
    %714 = vmatpush.msra.mxu0 0.0
    %715 = vmatpush.msra.mxu0 0.0
    %716 = vmatpush.msra.mxu0 0.0
    %717 = vmatpush.msra.mxu0 0.0
    %718 = vmatpush.msra.mxu0 0.0
    %719 = vmatpush.msra.mxu0 0.0
    %720 = vmatpush.msra.mxu0 0.0
    %721 = vmatpush.msra.mxu0 0.0
    %722 = vmatpush.msra.mxu0 0.0
    %723 = vmatpush.msra.mxu0 0.0
    %724 = vmatpush.msra.mxu0 0.0
    %725 = vmatpush.msra.mxu0 %v196
    %726 = vmatpush.msra.mxu0 %v707
    %727 = vmatmul.f32.gmra.mxu0 %v709
    %v728 = vpop.f32.mrf.mxu0
    %v729 = vadd.f32 0.0, %v728
    %730 = vdwg.mxu0
    %v731 = vmax.f32 %v729, 0.0
    %s732 = scalar_lea.vmem [#allocation8], 8
    %v733 = vld [vmem:[%s732] sm:$0xff]
    %734 = vmatpush.msra.mxu0 %v112
    %735 = vmatpush.msra.mxu0 %v111
    %736 = vmatpush.msra.mxu0 %v110
    %737 = vmatpush.msra.mxu0 %v109
    %738 = vmatpush.msra.mxu0 %v108
    %739 = vmatpush.msra.mxu0 %v107
    %740 = vmatpush.msra.mxu0 %v106
    %741 = vmatpush.msra.mxu0 %v105
    %742 = vmatpush.msra.mxu0 %v104
    %743 = vmatpush.msra.mxu0 %v103
    %744 = vmatpush.msra.mxu0 %v102
    %745 = vmatpush.msra.mxu0 %v101
    %746 = vmatpush.msra.mxu0 %v100
    %747 = vmatpush.msra.mxu0 %v99
    %748 = vmatpush.msra.mxu0 %v98
    %749 = vmatpush.msra.mxu0 %v97
    %750 = vmatmul.f32.gmra.mxu0 %v731
    %v751 = vpop.f32.mrf.mxu0
    %v752 = vadd.f32 0.0, %v751
    %753 = vdwg.mxu0
    %754 = vmatpush.msra.mxu0 %v112
    %755 = vmatpush.msra.mxu0 %v111
    %756 = vmatpush.msra.mxu0 %v110
    %757 = vmatpush.msra.mxu0 %v109
    %758 = vmatpush.msra.mxu0 %v108
    %759 = vmatpush.msra.mxu0 %v107
    %760 = vmatpush.msra.mxu0 %v106
    %761 = vmatpush.msra.mxu0 %v105
    %762 = vmatpush.msra.mxu0 %v104
    %763 = vmatpush.msra.mxu0 %v103
    %764 = vmatpush.msra.mxu0 %v102
    %765 = vmatpush.msra.mxu0 %v101
    %766 = vmatpush.msra.mxu0 %v100
    %767 = vmatpush.msra.mxu0 %v99
    %768 = vmatpush.msra.mxu0 %v98
    %769 = vmatpush.msra.mxu0 %v97
    %770 = vmatmul.f32.gmra.mxu0 %v752
    %v771 = vpop.f32.mrf.mxu0
    %v772 = vadd.f32 0.0, %v771
    %773 = vdwg.mxu0
    %774 = vmatpush.msra.mxu0 %v112
    %775 = vmatpush.msra.mxu0 %v111
    %776 = vmatpush.msra.mxu0 %v110
    %777 = vmatpush.msra.mxu0 %v109
    %778 = vmatpush.msra.mxu0 %v108
    %779 = vmatpush.msra.mxu0 %v107
    %780 = vmatpush.msra.mxu0 %v106
    %781 = vmatpush.msra.mxu0 %v105
    %782 = vmatpush.msra.mxu0 %v104
    %783 = vmatpush.msra.mxu0 %v103
    %784 = vmatpush.msra.mxu0 %v102
    %785 = vmatpush.msra.mxu0 %v101
    %786 = vmatpush.msra.mxu0 %v100
    %787 = vmatpush.msra.mxu0 %v99
    %788 = vmatpush.msra.mxu0 %v98
    %789 = vmatpush.msra.mxu0 %v97
    %790 = vmatmul.f32.gmra.mxu0 %v772
    %v791 = vpop.f32.mrf.mxu0
    %v792 = vadd.f32 0.0, %v791
    %793 = vdwg.mxu0
    %v795 = vsel %vm280, %v733, 0
    %797 = vmatpush.msra.mxu0 0.0
    %798 = vmatpush.msra.mxu0 0.0
    %799 = vmatpush.msra.mxu0 0.0
    %800 = vmatpush.msra.mxu0 0.0
    %801 = vmatpush.msra.mxu0 0.0
    %802 = vmatpush.msra.mxu0 0.0
    %803 = vmatpush.msra.mxu0 0.0
    %804 = vmatpush.msra.mxu0 0.0
    %805 = vmatpush.msra.mxu0 0.0
    %806 = vmatpush.msra.mxu0 0.0
    %807 = vmatpush.msra.mxu0 0.0
    %808 = vmatpush.msra.mxu0 %v196
    %809 = vmatpush.msra.mxu0 %v792
    %810 = vmatpush.msra.mxu0 %v772
    %811 = vmatpush.msra.mxu0 %v752
    %812 = vmatpush.msra.mxu0 %v731
    %813 = vmatmul.f32.gmra.mxu0 %v795
    %v814 = vpop.f32.mrf.mxu0
    %v815 = vadd.f32 0.0, %v814
    %816 = vdwg.mxu0
    %v817 = vmax.f32 %v815, 0.0
    %s818 = scalar_lea.vmem [#allocation10], 1
    %v819 = vld [vmem:[%s818] sm:$0x1]
    %820 = vmatpush.msra.mxu0 %v112
    %821 = vmatpush.msra.mxu0 %v111
    %822 = vmatpush.msra.mxu0 %v110
    %823 = vmatpush.msra.mxu0 %v109
    %824 = vmatpush.msra.mxu0 %v108
    %825 = vmatpush.msra.mxu0 %v107
    %826 = vmatpush.msra.mxu0 %v106
    %827 = vmatpush.msra.mxu0 %v105
    %828 = vmatpush.msra.mxu0 %v104
    %829 = vmatpush.msra.mxu0 %v103
    %830 = vmatpush.msra.mxu0 %v102
    %831 = vmatpush.msra.mxu0 %v101
    %832 = vmatpush.msra.mxu0 %v100
    %833 = vmatpush.msra.mxu0 %v99
    %834 = vmatpush.msra.mxu0 %v98
    %835 = vmatpush.msra.mxu0 %v97
    %836 = vmatmul.f32.gmra.mxu0 %v817
    %v837 = vpop.f32.mrf.mxu0
    %v838 = vadd.f32 0.0, %v837
    %839 = vdwg.mxu0
    %840 = vmatpush.msra.mxu0 %v112
    %841 = vmatpush.msra.mxu0 %v111
    %842 = vmatpush.msra.mxu0 %v110
    %843 = vmatpush.msra.mxu0 %v109
    %844 = vmatpush.msra.mxu0 %v108
    %845 = vmatpush.msra.mxu0 %v107
    %846 = vmatpush.msra.mxu0 %v106
    %847 = vmatpush.msra.mxu0 %v105
    %848 = vmatpush.msra.mxu0 %v104
    %849 = vmatpush.msra.mxu0 %v103
    %850 = vmatpush.msra.mxu0 %v102
    %851 = vmatpush.msra.mxu0 %v101
    %852 = vmatpush.msra.mxu0 %v100
    %853 = vmatpush.msra.mxu0 %v99
    %854 = vmatpush.msra.mxu0 %v98
    %855 = vmatpush.msra.mxu0 %v97
    %856 = vmatmul.f32.gmra.mxu0 %v838
    %v857 = vpop.f32.mrf.mxu0
    %v858 = vadd.f32 0.0, %v857
    %859 = vdwg.mxu0
    %860 = vmatpush.msra.mxu0 %v112
    %861 = vmatpush.msra.mxu0 %v111
    %862 = vmatpush.msra.mxu0 %v110
    %863 = vmatpush.msra.mxu0 %v109
    %864 = vmatpush.msra.mxu0 %v108
    %865 = vmatpush.msra.mxu0 %v107
    %866 = vmatpush.msra.mxu0 %v106
    %867 = vmatpush.msra.mxu0 %v105
    %868 = vmatpush.msra.mxu0 %v104
    %869 = vmatpush.msra.mxu0 %v103
    %870 = vmatpush.msra.mxu0 %v102
    %871 = vmatpush.msra.mxu0 %v101
    %872 = vmatpush.msra.mxu0 %v100
    %873 = vmatpush.msra.mxu0 %v99
    %874 = vmatpush.msra.mxu0 %v98
    %875 = vmatpush.msra.mxu0 %v97
    %876 = vmatmul.f32.gmra.mxu0 %v858
    %v877 = vpop.f32.mrf.mxu0
    %v878 = vadd.f32 0.0, %v877
    %879 = vdwg.mxu0
    %v881 = vsel %vm280, %v819, 0
    %883 = vmatpush.msra.mxu0 0.0
    %884 = vmatpush.msra.mxu0 0.0
    %885 = vmatpush.msra.mxu0 0.0
    %886 = vmatpush.msra.mxu0 0.0
    %887 = vmatpush.msra.mxu0 0.0
    %888 = vmatpush.msra.mxu0 0.0
    %889 = vmatpush.msra.mxu0 0.0
    %890 = vmatpush.msra.mxu0 0.0
    %891 = vmatpush.msra.mxu0 0.0
    %892 = vmatpush.msra.mxu0 0.0
    %893 = vmatpush.msra.mxu0 0.0
    %894 = vmatpush.msra.mxu0 %v196
    %895 = vmatpush.msra.mxu0 %v878
    %896 = vmatpush.msra.mxu0 %v858
    %897 = vmatpush.msra.mxu0 %v838
    %898 = vmatpush.msra.mxu0 %v817
    %899 = vmatmul.f32.gmra.mxu0 %v881
    %v900 = vpop.f32.mrf.mxu0
    %v901 = vadd.f32 0.0, %v900
    %902 = vdwg.mxu0
    %v903 = vmax.f32 %v901, 0.0
    %v904 = vsel %vm194, %v903, 0.0
    %905 = vadd.xlane.f32.xlu0 %v904
    %v906 = vpop.xlane.xlu0 %905
    %v907 = vmul.f32 %v906, %v399
    %v908 = vsub.f32 %v903, %v907
    %v909 = vmul.f32 %v908, %v908
    %v910 = vsel %vm194, %v909, 0.0
    %911 = vadd.xlane.f32.xlu0 %v910
    %v912 = vpop.xlane.xlu0 %911
    %v913 = vmul.f32 %v912, %v399
    %v914 = vadd.f32 %v913, 1e-05
    %v915 = vrsqrt.pop %v914
    %v916 = vmul.f32 %v915, %v914
    %v917 = vmul.f32 %v916, %v915
    %v918 = vmul.f32 0.5, %v917
    %v919 = vsub.f32 1.5, %v918
    %v920 = vmul.f32 %v915, %v919
    %vm921 = vweird.f32 %v914
    %vm922 = vweird.f32 %v915
    %vm923 = vmor %vm921, %vm922
    %v924 = vsel %vm923, %v915, %v920
    %v925 = vmul.f32 %v908, %v924
    %926 = vxpose.xlu0.b32.start [1/16] %v925, 128
    %927 = vxpose.xlu0.b32.cont [2/16] 0.0, 128
    %928 = vxpose.xlu0.b32.cont [3/16] 0.0, 128
    %929 = vxpose.xlu0.b32.cont [4/16] 0.0, 128
    %930 = vxpose.xlu0.b32.cont [5/16] 0.0, 128
    %931 = vxpose.xlu0.b32.cont [6/16] 0.0, 128
    %932 = vxpose.xlu0.b32.cont [7/16] 0.0, 128
    %933 = vxpose.xlu0.b32.cont [8/16] 0.0, 128
    %934 = vxpose.xlu0.b32.cont [9/16] 0.0, 128
    %935 = vxpose.xlu0.b32.cont [10/16] 0.0, 128
    %936 = vxpose.xlu0.b32.cont [11/16] 0.0, 128
    %937 = vxpose.xlu0.b32.cont [12/16] 0.0, 128
    %938 = vxpose.xlu0.b32.cont [13/16] 0.0, 128
    %939 = vxpose.xlu0.b32.cont [14/16] 0.0, 128
    %940 = vxpose.xlu0.b32.cont [15/16] 0.0, 128
    %941 = vxpose.xlu0.b32.end [16/16] 0.0, 128
    %v942 = vpop.trf.xlu0
    %v943 = vpop.trf.xlu0
    %v944 = vpop.trf.xlu0
    %v945 = vpop.trf.xlu0
    %v946 = vpop.trf.xlu0
    %v947 = vpop.trf.xlu0
    %v948 = vpop.trf.xlu0
    %v949 = vpop.trf.xlu0
    %v950 = vpop.trf.xlu0
    %v951 = vpop.trf.xlu0
    %v952 = vpop.trf.xlu0
    %v953 = vpop.trf.xlu0
    %v954 = vpop.trf.xlu0
    %v955 = vpop.trf.xlu0
    %v956 = vpop.trf.xlu0
    %v957 = vpop.trf.xlu0
    %959 = vset.pattern.permute.xlu0 0
    %960 = vperm.xlu0 %959, %v942
    %v961 = vpop.permute.xlu0 %960
    %964 = vset.pattern.permute.xlu0 0
    %965 = vperm.xlu0 %964, %v943
    %v966 = vpop.permute.xlu0 %965
    %969 = vset.pattern.permute.xlu0 0
    %970 = vperm.xlu0 %969, %v944
    %v971 = vpop.permute.xlu0 %970
    %974 = vset.pattern.permute.xlu0 0
    %975 = vperm.xlu0 %974, %v945
    %v976 = vpop.permute.xlu0 %975
    %979 = vset.pattern.permute.xlu0 0
    %980 = vperm.xlu0 %979, %v946
    %v981 = vpop.permute.xlu0 %980
    %984 = vset.pattern.permute.xlu0 0
    %985 = vperm.xlu0 %984, %v947
    %v986 = vpop.permute.xlu0 %985
    %989 = vset.pattern.permute.xlu0 0
    %990 = vperm.xlu0 %989, %v948
    %v991 = vpop.permute.xlu0 %990
    %994 = vset.pattern.permute.xlu0 0
    %995 = vperm.xlu0 %994, %v949
    %v996 = vpop.permute.xlu0 %995
    %999 = vset.pattern.permute.xlu0 0
    %1000 = vperm.xlu0 %999, %v950
    %v1001 = vpop.permute.xlu0 %1000
    %1004 = vset.pattern.permute.xlu0 0
    %1005 = vperm.xlu0 %1004, %v951
    %v1006 = vpop.permute.xlu0 %1005
    %1009 = vset.pattern.permute.xlu0 0
    %1010 = vperm.xlu0 %1009, %v952
    %v1011 = vpop.permute.xlu0 %1010
    %1014 = vset.pattern.permute.xlu0 0
    %1015 = vperm.xlu0 %1014, %v953
    %v1016 = vpop.permute.xlu0 %1015
    %1019 = vset.pattern.permute.xlu0 0
    %1020 = vperm.xlu0 %1019, %v954
    %v1021 = vpop.permute.xlu0 %1020
    %1024 = vset.pattern.permute.xlu0 0
    %1025 = vperm.xlu0 %1024, %v955
    %v1026 = vpop.permute.xlu0 %1025
    %1029 = vset.pattern.permute.xlu0 0
    %1030 = vperm.xlu0 %1029, %v956
    %v1031 = vpop.permute.xlu0 %1030
    %1034 = vset.pattern.permute.xlu0 0
    %1035 = vperm.xlu0 %1034, %v957
    %v1036 = vpop.permute.xlu0 %1035
    %v1038 = vperm.slane %v925, 0
    %vm1039 = vcmp.gt.f32.partialorder %v961, %v1038
    %vm1040 = vcmp.gt.f32.partialorder %v966, %v1038
    %vm1041 = vcmp.gt.f32.partialorder %v971, %v1038
    %vm1042 = vcmp.gt.f32.partialorder %v976, %v1038
    %vm1043 = vcmp.gt.f32.partialorder %v981, %v1038
    %vm1044 = vcmp.gt.f32.partialorder %v986, %v1038
    %vm1045 = vcmp.gt.f32.partialorder %v991, %v1038
    %vm1046 = vcmp.gt.f32.partialorder %v996, %v1038
    %vm1047 = vcmp.gt.f32.partialorder %v1001, %v1038
    %vm1048 = vcmp.gt.f32.partialorder %v1006, %v1038
    %vm1049 = vcmp.gt.f32.partialorder %v1011, %v1038
    %vm1050 = vcmp.gt.f32.partialorder %v1016, %v1038
    %vm1051 = vcmp.gt.f32.partialorder %v1021, %v1038
    %vm1052 = vcmp.gt.f32.partialorder %v1026, %v1038
    %vm1053 = vcmp.gt.f32.partialorder %v1031, %v1038
    %vm1054 = vcmp.gt.f32.partialorder %v1036, %v1038
    %v1055 = vsel %vm1039, 1, 0
    %v1056 = vsel %vm1040, 1, 0
    %v1057 = vsel %vm1041, 1, 0
    %v1058 = vsel %vm1042, 1, 0
    %v1059 = vsel %vm1043, 1, 0
    %v1060 = vsel %vm1044, 1, 0
    %v1061 = vsel %vm1045, 1, 0
    %v1062 = vsel %vm1046, 1, 0
    %v1063 = vsel %vm1047, 1, 0
    %v1064 = vsel %vm1048, 1, 0
    %v1065 = vsel %vm1049, 1, 0
    %v1066 = vsel %vm1050, 1, 0
    %v1067 = vsel %vm1051, 1, 0
    %v1068 = vsel %vm1052, 1, 0
    %v1069 = vsel %vm1053, 1, 0
    %v1070 = vsel %vm1054, 1, 0
    %v1071 = vcvt.s32.f32 %v1055
    %v1072 = vcvt.s32.f32 %v1056
    %v1073 = vcvt.s32.f32 %v1057
    %v1074 = vcvt.s32.f32 %v1058
    %v1075 = vcvt.s32.f32 %v1059
    %v1076 = vcvt.s32.f32 %v1060
    %v1077 = vcvt.s32.f32 %v1061
    %v1078 = vcvt.s32.f32 %v1062
    %v1079 = vcvt.s32.f32 %v1063
    %v1080 = vcvt.s32.f32 %v1064
    %v1081 = vcvt.s32.f32 %v1065
    %v1082 = vcvt.s32.f32 %v1066
    %v1083 = vcvt.s32.f32 %v1067
    %v1084 = vcvt.s32.f32 %v1068
    %v1085 = vcvt.s32.f32 %v1069
    %v1086 = vcvt.s32.f32 %v1070
    %v1087 = vadd.f32 %v1071, %v1072
    %v1088 = vadd.f32 %v1087, %v1073
    %v1089 = vadd.f32 %v1088, %v1074
    %v1090 = vadd.f32 %v1089, %v1075
    %v1091 = vadd.f32 %v1090, %v1076
    %v1092 = vadd.f32 %v1091, %v1077
    %v1093 = vadd.f32 %v1092, %v1078
    %v1094 = vadd.f32 %v1093, %v1079
    %v1095 = vadd.f32 %v1094, %v1080
    %v1096 = vadd.f32 %v1095, %v1081
    %v1097 = vadd.f32 %v1096, %v1082
    %v1098 = vadd.f32 %v1097, %v1083
    %v1099 = vadd.f32 %v1098, %v1084
    %v1100 = vadd.f32 %v1099, %v1085
    %v1101 = vadd.f32 %v1100, %v1086
    %v1102 = vrot.slane %v1101, 4
    %v1103 = vadd.f32 %v1101, %v1102
    %v1104 = vrot.slane %v1103, 2
    %v1105 = vadd.f32 %v1103, %v1104
    %v1106 = vrot.slane %v1105, 1
    %v1107 = vadd.f32 %v1105, %v1106
    %vm1108 = vcmp.lt.f32.partialorder %v1107, 14.0
    %v1109 = vsel %vm1108, %v925, inf
    %v1110 = vsel %vm194, %v1109, inf
    %1111 = vmin.xlane.f32.xlu0 %v1110
    %v1112 = vpop.xlane.xlu0 %1111
    %v1113 = vand.u32 2147483647, %v1112
    %v1114 = vsel %vm1108, 1.0, -1.0
    %v1115 = vsub.f32 %v925, %v1113
    %v1116 = vmul.f32 %v1114, 0.1
    %v1117 = vadd.f32 %v1115, %v1116
    %v1118 = vxor.u32 %v1117, 2147483648
    %v1119 = vmul.f32 %v1118, 1.442695
    %v1120 = vpow.pop %v1119
    %v1121 = vadd.f32 %v1120, 1.0
    %v1122 = vrcp.pop %v1121
    %v1123 = vmul.f32 %v1121, %v1122
    %v1124 = vsub.f32 1.0, %v1123
    %v1125 = vmul.f32 %v1122, %v1124
    %v1126 = vadd.f32 %v1122, %v1125
    %vm1127 = vweird.f32 %v1121
    %vm1128 = vweird.f32 %v1122
    %vm1129 = vmor %vm1127, %vm1128
    %v1130 = vsel %vm1129, %v1122, %v1126
    %v1131 = vand.u32 2147483647, %v1121
    %vm1132 = vcmp.eq.f32.partialorder %v1131, 8.507059e+37
    %v1133 = vand.u32 %v1121, 2147483648
    %v1134 = vor.u32 1.1754944e-38, %v1133
    %v1135 = vsel %vm1132, %v1134, %v1130
    %v1136 = vmul.f32 1.0, %v1135
    %v1138 = vrot.slane %v1136, 7
    %v1140 = vsel %vm194, %v925, %v1138
    %s1141 = scalar_lea.vmem [#allocation7], 16
    %v1142 = vld [vmem:[%s1141] sm:$0xff]
    %1143 = vmatpush.msra.mxu0 %v112
    %1144 = vmatpush.msra.mxu0 %v111
    %1145 = vmatpush.msra.mxu0 %v110
    %1146 = vmatpush.msra.mxu0 %v109
    %1147 = vmatpush.msra.mxu0 %v108
    %1148 = vmatpush.msra.mxu0 %v107
    %1149 = vmatpush.msra.mxu0 %v106
    %1150 = vmatpush.msra.mxu0 %v105
    %1151 = vmatpush.msra.mxu0 %v104
    %1152 = vmatpush.msra.mxu0 %v103
    %1153 = vmatpush.msra.mxu0 %v102
    %1154 = vmatpush.msra.mxu0 %v101
    %1155 = vmatpush.msra.mxu0 %v100
    %1156 = vmatpush.msra.mxu0 %v99
    %1157 = vmatpush.msra.mxu0 %v98
    %1158 = vmatpush.msra.mxu0 %v97
    %1159 = vmatmul.f32.gmra.mxu0 %v1140
    %v1160 = vpop.f32.mrf.mxu0
    %v1161 = vadd.f32 0.0, %v1160
    %1162 = vdwg.mxu0
    %1163 = vmatpush.msra.mxu0 %v112
    %1164 = vmatpush.msra.mxu0 %v111
    %1165 = vmatpush.msra.mxu0 %v110
    %1166 = vmatpush.msra.mxu0 %v109
    %1167 = vmatpush.msra.mxu0 %v108
    %1168 = vmatpush.msra.mxu0 %v107
    %1169 = vmatpush.msra.mxu0 %v106
    %1170 = vmatpush.msra.mxu0 %v105
    %1171 = vmatpush.msra.mxu0 %v104
    %1172 = vmatpush.msra.mxu0 %v103
    %1173 = vmatpush.msra.mxu0 %v102
    %1174 = vmatpush.msra.mxu0 %v101
    %1175 = vmatpush.msra.mxu0 %v100
    %1176 = vmatpush.msra.mxu0 %v99
    %1177 = vmatpush.msra.mxu0 %v98
    %1178 = vmatpush.msra.mxu0 %v97
    %1179 = vmatmul.f32.gmra.mxu0 %v1161
    %v1180 = vpop.f32.mrf.mxu0
    %v1181 = vadd.f32 0.0, %v1180
    %1182 = vdwg.mxu0
    %1183 = vmatpush.msra.mxu0 %v112
    %1184 = vmatpush.msra.mxu0 %v111
    %1185 = vmatpush.msra.mxu0 %v110
    %1186 = vmatpush.msra.mxu0 %v109
    %1187 = vmatpush.msra.mxu0 %v108
    %1188 = vmatpush.msra.mxu0 %v107
    %1189 = vmatpush.msra.mxu0 %v106
    %1190 = vmatpush.msra.mxu0 %v105
    %1191 = vmatpush.msra.mxu0 %v104
    %1192 = vmatpush.msra.mxu0 %v103
    %1193 = vmatpush.msra.mxu0 %v102
    %1194 = vmatpush.msra.mxu0 %v101
    %1195 = vmatpush.msra.mxu0 %v100
    %1196 = vmatpush.msra.mxu0 %v99
    %1197 = vmatpush.msra.mxu0 %v98
    %1198 = vmatpush.msra.mxu0 %v97
    %1199 = vmatmul.f32.gmra.mxu0 %v1181
    %v1200 = vpop.f32.mrf.mxu0
    %v1201 = vadd.f32 0.0, %v1200
    %1202 = vdwg.mxu0
    %v1204 = vrot.slane %v1161, 6
    %v1207 = vrot.slane %v1181, 4
    %v1210 = vrot.slane %v1201, 2
    %v1212 = vsel %vm184, %v1140, %v1204
    %v1213 = vsel %vm186, %v1212, %v1207
    %v1214 = vsel %vm188, %v1213, %v1210
    %v1216 = vsel %vm190, %v1142, 0
    %1218 = vmatpush.msra.mxu0 0.0
    %1219 = vmatpush.msra.mxu0 0.0
    %1220 = vmatpush.msra.mxu0 0.0
    %1221 = vmatpush.msra.mxu0 0.0
    %1222 = vmatpush.msra.mxu0 0.0
    %1223 = vmatpush.msra.mxu0 0.0
    %1224 = vmatpush.msra.mxu0 0.0
    %1225 = vmatpush.msra.mxu0 0.0
    %1226 = vmatpush.msra.mxu0 0.0
    %1227 = vmatpush.msra.mxu0 0.0
    %1228 = vmatpush.msra.mxu0 0.0
    %1229 = vmatpush.msra.mxu0 0.0
    %1230 = vmatpush.msra.mxu0 0.0
    %1231 = vmatpush.msra.mxu0 0.0
    %1232 = vmatpush.msra.mxu0 %v196
    %1233 = vmatpush.msra.mxu0 %v1214
    %1234 = vmatmul.f32.gmra.mxu0 %v1216
    %v1235 = vpop.f32.mrf.mxu0
    %v1236 = vadd.f32 0.0, %v1235
    %1237 = vdwg.mxu0
    %v1238 = vmax.f32 %v1236, 0.0
    %s1239 = scalar_lea.vmem [#allocation8], 16
    %v1240 = vld [vmem:[%s1239] sm:$0xff]
    %1241 = vmatpush.msra.mxu0 %v112
    %1242 = vmatpush.msra.mxu0 %v111
    %1243 = vmatpush.msra.mxu0 %v110
    %1244 = vmatpush.msra.mxu0 %v109
    %1245 = vmatpush.msra.mxu0 %v108
    %1246 = vmatpush.msra.mxu0 %v107
    %1247 = vmatpush.msra.mxu0 %v106
    %1248 = vmatpush.msra.mxu0 %v105
    %1249 = vmatpush.msra.mxu0 %v104
    %1250 = vmatpush.msra.mxu0 %v103
    %1251 = vmatpush.msra.mxu0 %v102
    %1252 = vmatpush.msra.mxu0 %v101
    %1253 = vmatpush.msra.mxu0 %v100
    %1254 = vmatpush.msra.mxu0 %v99
    %1255 = vmatpush.msra.mxu0 %v98
    %1256 = vmatpush.msra.mxu0 %v97
    %1257 = vmatmul.f32.gmra.mxu0 %v1238
    %v1258 = vpop.f32.mrf.mxu0
    %v1259 = vadd.f32 0.0, %v1258
    %1260 = vdwg.mxu0
    %1261 = vmatpush.msra.mxu0 %v112
    %1262 = vmatpush.msra.mxu0 %v111
    %1263 = vmatpush.msra.mxu0 %v110
    %1264 = vmatpush.msra.mxu0 %v109
    %1265 = vmatpush.msra.mxu0 %v108
    %1266 = vmatpush.msra.mxu0 %v107
    %1267 = vmatpush.msra.mxu0 %v106
    %1268 = vmatpush.msra.mxu0 %v105
    %1269 = vmatpush.msra.mxu0 %v104
    %1270 = vmatpush.msra.mxu0 %v103
    %1271 = vmatpush.msra.mxu0 %v102
    %1272 = vmatpush.msra.mxu0 %v101
    %1273 = vmatpush.msra.mxu0 %v100
    %1274 = vmatpush.msra.mxu0 %v99
    %1275 = vmatpush.msra.mxu0 %v98
    %1276 = vmatpush.msra.mxu0 %v97
    %1277 = vmatmul.f32.gmra.mxu0 %v1259
    %v1278 = vpop.f32.mrf.mxu0
    %v1279 = vadd.f32 0.0, %v1278
    %1280 = vdwg.mxu0
    %1281 = vmatpush.msra.mxu0 %v112
    %1282 = vmatpush.msra.mxu0 %v111
    %1283 = vmatpush.msra.mxu0 %v110
    %1284 = vmatpush.msra.mxu0 %v109
    %1285 = vmatpush.msra.mxu0 %v108
    %1286 = vmatpush.msra.mxu0 %v107
    %1287 = vmatpush.msra.mxu0 %v106
    %1288 = vmatpush.msra.mxu0 %v105
    %1289 = vmatpush.msra.mxu0 %v104
    %1290 = vmatpush.msra.mxu0 %v103
    %1291 = vmatpush.msra.mxu0 %v102
    %1292 = vmatpush.msra.mxu0 %v101
    %1293 = vmatpush.msra.mxu0 %v100
    %1294 = vmatpush.msra.mxu0 %v99
    %1295 = vmatpush.msra.mxu0 %v98
    %1296 = vmatpush.msra.mxu0 %v97
    %1297 = vmatmul.f32.gmra.mxu0 %v1279
    %v1298 = vpop.f32.mrf.mxu0
    %v1299 = vadd.f32 0.0, %v1298
    %1300 = vdwg.mxu0
    %v1302 = vsel %vm280, %v1240, 0
    %1304 = vmatpush.msra.mxu0 0.0
    %1305 = vmatpush.msra.mxu0 0.0
    %1306 = vmatpush.msra.mxu0 0.0
    %1307 = vmatpush.msra.mxu0 0.0
    %1308 = vmatpush.msra.mxu0 0.0
    %1309 = vmatpush.msra.mxu0 0.0
    %1310 = vmatpush.msra.mxu0 0.0
    %1311 = vmatpush.msra.mxu0 0.0
    %1312 = vmatpush.msra.mxu0 0.0
    %1313 = vmatpush.msra.mxu0 0.0
    %1314 = vmatpush.msra.mxu0 0.0
    %1315 = vmatpush.msra.mxu0 %v196
    %1316 = vmatpush.msra.mxu0 %v1299
    %1317 = vmatpush.msra.mxu0 %v1279
    %1318 = vmatpush.msra.mxu0 %v1259
    %1319 = vmatpush.msra.mxu0 %v1238
    %1320 = vmatmul.f32.gmra.mxu0 %v1302
    %v1321 = vpop.f32.mrf.mxu0
    %v1322 = vadd.f32 0.0, %v1321
    %1323 = vdwg.mxu0
    %v1324 = vmax.f32 %v1322, 0.0
    %s1325 = scalar_lea.vmem [#allocation10], 2
    %v1326 = vld [vmem:[%s1325] sm:$0x1]
    %1327 = vmatpush.msra.mxu0 %v112
    %1328 = vmatpush.msra.mxu0 %v111
    %1329 = vmatpush.msra.mxu0 %v110
    %1330 = vmatpush.msra.mxu0 %v109
    %1331 = vmatpush.msra.mxu0 %v108
    %1332 = vmatpush.msra.mxu0 %v107
    %1333 = vmatpush.msra.mxu0 %v106
    %1334 = vmatpush.msra.mxu0 %v105
    %1335 = vmatpush.msra.mxu0 %v104
    %1336 = vmatpush.msra.mxu0 %v103
    %1337 = vmatpush.msra.mxu0 %v102
    %1338 = vmatpush.msra.mxu0 %v101
    %1339 = vmatpush.msra.mxu0 %v100
    %1340 = vmatpush.msra.mxu0 %v99
    %1341 = vmatpush.msra.mxu0 %v98
    %1342 = vmatpush.msra.mxu0 %v97
    %1343 = vmatmul.f32.gmra.mxu0 %v1324
    %v1344 = vpop.f32.mrf.mxu0
    %v1345 = vadd.f32 0.0, %v1344
    %1346 = vdwg.mxu0
    %1347 = vmatpush.msra.mxu0 %v112
    %1348 = vmatpush.msra.mxu0 %v111
    %1349 = vmatpush.msra.mxu0 %v110
    %1350 = vmatpush.msra.mxu0 %v109
    %1351 = vmatpush.msra.mxu0 %v108
    %1352 = vmatpush.msra.mxu0 %v107
    %1353 = vmatpush.msra.mxu0 %v106
    %1354 = vmatpush.msra.mxu0 %v105
    %1355 = vmatpush.msra.mxu0 %v104
    %1356 = vmatpush.msra.mxu0 %v103
    %1357 = vmatpush.msra.mxu0 %v102
    %1358 = vmatpush.msra.mxu0 %v101
    %1359 = vmatpush.msra.mxu0 %v100
    %1360 = vmatpush.msra.mxu0 %v99
    %1361 = vmatpush.msra.mxu0 %v98
    %1362 = vmatpush.msra.mxu0 %v97
    %1363 = vmatmul.f32.gmra.mxu0 %v1345
    %v1364 = vpop.f32.mrf.mxu0
    %v1365 = vadd.f32 0.0, %v1364
    %1366 = vdwg.mxu0
    %1367 = vmatpush.msra.mxu0 %v112
    %1368 = vmatpush.msra.mxu0 %v111
    %1369 = vmatpush.msra.mxu0 %v110
    %1370 = vmatpush.msra.mxu0 %v109
    %1371 = vmatpush.msra.mxu0 %v108
    %1372 = vmatpush.msra.mxu0 %v107
    %1373 = vmatpush.msra.mxu0 %v106
    %1374 = vmatpush.msra.mxu0 %v105
    %1375 = vmatpush.msra.mxu0 %v104
    %1376 = vmatpush.msra.mxu0 %v103
    %1377 = vmatpush.msra.mxu0 %v102
    %1378 = vmatpush.msra.mxu0 %v101
    %1379 = vmatpush.msra.mxu0 %v100
    %1380 = vmatpush.msra.mxu0 %v99
    %1381 = vmatpush.msra.mxu0 %v98
    %1382 = vmatpush.msra.mxu0 %v97
    %1383 = vmatmul.f32.gmra.mxu0 %v1365
    %v1384 = vpop.f32.mrf.mxu0
    %v1385 = vadd.f32 0.0, %v1384
    %1386 = vdwg.mxu0
    %v1388 = vsel %vm280, %v1326, 0
    %1390 = vmatpush.msra.mxu0 0.0
    %1391 = vmatpush.msra.mxu0 0.0
    %1392 = vmatpush.msra.mxu0 0.0
    %1393 = vmatpush.msra.mxu0 0.0
    %1394 = vmatpush.msra.mxu0 0.0
    %1395 = vmatpush.msra.mxu0 0.0
    %1396 = vmatpush.msra.mxu0 0.0
    %1397 = vmatpush.msra.mxu0 0.0
    %1398 = vmatpush.msra.mxu0 0.0
    %1399 = vmatpush.msra.mxu0 0.0
    %1400 = vmatpush.msra.mxu0 0.0
    %1401 = vmatpush.msra.mxu0 %v196
    %1402 = vmatpush.msra.mxu0 %v1385
    %1403 = vmatpush.msra.mxu0 %v1365
    %1404 = vmatpush.msra.mxu0 %v1345
    %1405 = vmatpush.msra.mxu0 %v1324
    %1406 = vmatmul.f32.gmra.mxu0 %v1388
    %v1407 = vpop.f32.mrf.mxu0
    %v1408 = vadd.f32 0.0, %v1407
    %1409 = vdwg.mxu0
    %v1410 = vmax.f32 %v1408, 0.0
    %v1411 = vsel %vm194, %v1410, 0.0
    %1412 = vadd.xlane.f32.xlu0 %v1411
    %v1413 = vpop.xlane.xlu0 %1412
    %v1414 = vmul.f32 %v1413, %v399
    %v1415 = vsub.f32 %v1410, %v1414
    %v1416 = vmul.f32 %v1415, %v1415
    %v1417 = vsel %vm194, %v1416, 0.0
    %1418 = vadd.xlane.f32.xlu0 %v1417
    %v1419 = vpop.xlane.xlu0 %1418
    %v1420 = vmul.f32 %v1419, %v399
    %v1421 = vadd.f32 %v1420, 1e-05
    %v1422 = vrsqrt.pop %v1421
    %v1423 = vmul.f32 %v1422, %v1421
    %v1424 = vmul.f32 %v1423, %v1422
    %v1425 = vmul.f32 0.5, %v1424
    %v1426 = vsub.f32 1.5, %v1425
    %v1427 = vmul.f32 %v1422, %v1426
    %vm1428 = vweird.f32 %v1421
    %vm1429 = vweird.f32 %v1422
    %vm1430 = vmor %vm1428, %vm1429
    %v1431 = vsel %vm1430, %v1422, %v1427
    %v1432 = vmul.f32 %v1415, %v1431
    %1433 = vxpose.xlu0.b32.start [1/16] %v1432, 128
    %1434 = vxpose.xlu0.b32.cont [2/16] 0.0, 128
    %1435 = vxpose.xlu0.b32.cont [3/16] 0.0, 128
    %1436 = vxpose.xlu0.b32.cont [4/16] 0.0, 128
    %1437 = vxpose.xlu0.b32.cont [5/16] 0.0, 128
    %1438 = vxpose.xlu0.b32.cont [6/16] 0.0, 128
    %1439 = vxpose.xlu0.b32.cont [7/16] 0.0, 128
    %1440 = vxpose.xlu0.b32.cont [8/16] 0.0, 128
    %1441 = vxpose.xlu0.b32.cont [9/16] 0.0, 128
    %1442 = vxpose.xlu0.b32.cont [10/16] 0.0, 128
    %1443 = vxpose.xlu0.b32.cont [11/16] 0.0, 128
    %1444 = vxpose.xlu0.b32.cont [12/16] 0.0, 128
    %1445 = vxpose.xlu0.b32.cont [13/16] 0.0, 128
    %1446 = vxpose.xlu0.b32.cont [14/16] 0.0, 128
    %1447 = vxpose.xlu0.b32.cont [15/16] 0.0, 128
    %1448 = vxpose.xlu0.b32.end [16/16] 0.0, 128
    %v1449 = vpop.trf.xlu0
    %v1450 = vpop.trf.xlu0
    %v1451 = vpop.trf.xlu0
    %v1452 = vpop.trf.xlu0
    %v1453 = vpop.trf.xlu0
    %v1454 = vpop.trf.xlu0
    %v1455 = vpop.trf.xlu0
    %v1456 = vpop.trf.xlu0
    %v1457 = vpop.trf.xlu0
    %v1458 = vpop.trf.xlu0
    %v1459 = vpop.trf.xlu0
    %v1460 = vpop.trf.xlu0
    %v1461 = vpop.trf.xlu0
    %v1462 = vpop.trf.xlu0
    %v1463 = vpop.trf.xlu0
    %v1464 = vpop.trf.xlu0
    %1466 = vset.pattern.permute.xlu0 0
    %1467 = vperm.xlu0 %1466, %v1449
    %v1468 = vpop.permute.xlu0 %1467
    %1471 = vset.pattern.permute.xlu0 0
    %1472 = vperm.xlu0 %1471, %v1450
    %v1473 = vpop.permute.xlu0 %1472
    %1476 = vset.pattern.permute.xlu0 0
    %1477 = vperm.xlu0 %1476, %v1451
    %v1478 = vpop.permute.xlu0 %1477
    %1481 = vset.pattern.permute.xlu0 0
    %1482 = vperm.xlu0 %1481, %v1452
    %v1483 = vpop.permute.xlu0 %1482
    %1486 = vset.pattern.permute.xlu0 0
    %1487 = vperm.xlu0 %1486, %v1453
    %v1488 = vpop.permute.xlu0 %1487
    %1491 = vset.pattern.permute.xlu0 0
    %1492 = vperm.xlu0 %1491, %v1454
    %v1493 = vpop.permute.xlu0 %1492
    %1496 = vset.pattern.permute.xlu0 0
    %1497 = vperm.xlu0 %1496, %v1455
    %v1498 = vpop.permute.xlu0 %1497
    %1501 = vset.pattern.permute.xlu0 0
    %1502 = vperm.xlu0 %1501, %v1456
    %v1503 = vpop.permute.xlu0 %1502
    %1506 = vset.pattern.permute.xlu0 0
    %1507 = vperm.xlu0 %1506, %v1457
    %v1508 = vpop.permute.xlu0 %1507
    %1511 = vset.pattern.permute.xlu0 0
    %1512 = vperm.xlu0 %1511, %v1458
    %v1513 = vpop.permute.xlu0 %1512
    %1516 = vset.pattern.permute.xlu0 0
    %1517 = vperm.xlu0 %1516, %v1459
    %v1518 = vpop.permute.xlu0 %1517
    %1521 = vset.pattern.permute.xlu0 0
    %1522 = vperm.xlu0 %1521, %v1460
    %v1523 = vpop.permute.xlu0 %1522
    %1526 = vset.pattern.permute.xlu0 0
    %1527 = vperm.xlu0 %1526, %v1461
    %v1528 = vpop.permute.xlu0 %1527
    %1531 = vset.pattern.permute.xlu0 0
    %1532 = vperm.xlu0 %1531, %v1462
    %v1533 = vpop.permute.xlu0 %1532
    %1536 = vset.pattern.permute.xlu0 0
    %1537 = vperm.xlu0 %1536, %v1463
    %v1538 = vpop.permute.xlu0 %1537
    %1541 = vset.pattern.permute.xlu0 0
    %1542 = vperm.xlu0 %1541, %v1464
    %v1543 = vpop.permute.xlu0 %1542
    %v1545 = vperm.slane %v1432, 0
    %vm1546 = vcmp.gt.f32.partialorder %v1468, %v1545
    %vm1547 = vcmp.gt.f32.partialorder %v1473, %v1545
    %vm1548 = vcmp.gt.f32.partialorder %v1478, %v1545
    %vm1549 = vcmp.gt.f32.partialorder %v1483, %v1545
    %vm1550 = vcmp.gt.f32.partialorder %v1488, %v1545
    %vm1551 = vcmp.gt.f32.partialorder %v1493, %v1545
    %vm1552 = vcmp.gt.f32.partialorder %v1498, %v1545
    %vm1553 = vcmp.gt.f32.partialorder %v1503, %v1545
    %vm1554 = vcmp.gt.f32.partialorder %v1508, %v1545
    %vm1555 = vcmp.gt.f32.partialorder %v1513, %v1545
    %vm1556 = vcmp.gt.f32.partialorder %v1518, %v1545
    %vm1557 = vcmp.gt.f32.partialorder %v1523, %v1545
    %vm1558 = vcmp.gt.f32.partialorder %v1528, %v1545
    %vm1559 = vcmp.gt.f32.partialorder %v1533, %v1545
    %vm1560 = vcmp.gt.f32.partialorder %v1538, %v1545
    %vm1561 = vcmp.gt.f32.partialorder %v1543, %v1545
    %v1562 = vsel %vm1546, 1, 0
    %v1563 = vsel %vm1547, 1, 0
    %v1564 = vsel %vm1548, 1, 0
    %v1565 = vsel %vm1549, 1, 0
    %v1566 = vsel %vm1550, 1, 0
    %v1567 = vsel %vm1551, 1, 0
    %v1568 = vsel %vm1552, 1, 0
    %v1569 = vsel %vm1553, 1, 0
    %v1570 = vsel %vm1554, 1, 0
    %v1571 = vsel %vm1555, 1, 0
    %v1572 = vsel %vm1556, 1, 0
    %v1573 = vsel %vm1557, 1, 0
    %v1574 = vsel %vm1558, 1, 0
    %v1575 = vsel %vm1559, 1, 0
    %v1576 = vsel %vm1560, 1, 0
    %v1577 = vsel %vm1561, 1, 0
    %v1578 = vcvt.s32.f32 %v1562
    %v1579 = vcvt.s32.f32 %v1563
    %v1580 = vcvt.s32.f32 %v1564
    %v1581 = vcvt.s32.f32 %v1565
    %v1582 = vcvt.s32.f32 %v1566
    %v1583 = vcvt.s32.f32 %v1567
    %v1584 = vcvt.s32.f32 %v1568
    %v1585 = vcvt.s32.f32 %v1569
    %v1586 = vcvt.s32.f32 %v1570
    %v1587 = vcvt.s32.f32 %v1571
    %v1588 = vcvt.s32.f32 %v1572
    %v1589 = vcvt.s32.f32 %v1573
    %v1590 = vcvt.s32.f32 %v1574
    %v1591 = vcvt.s32.f32 %v1575
    %v1592 = vcvt.s32.f32 %v1576
    %v1593 = vcvt.s32.f32 %v1577
    %v1594 = vadd.f32 %v1578, %v1579
    %v1595 = vadd.f32 %v1594, %v1580
    %v1596 = vadd.f32 %v1595, %v1581
    %v1597 = vadd.f32 %v1596, %v1582
    %v1598 = vadd.f32 %v1597, %v1583
    %v1599 = vadd.f32 %v1598, %v1584
    %v1600 = vadd.f32 %v1599, %v1585
    %v1601 = vadd.f32 %v1600, %v1586
    %v1602 = vadd.f32 %v1601, %v1587
    %v1603 = vadd.f32 %v1602, %v1588
    %v1604 = vadd.f32 %v1603, %v1589
    %v1605 = vadd.f32 %v1604, %v1590
    %v1606 = vadd.f32 %v1605, %v1591
    %v1607 = vadd.f32 %v1606, %v1592
    %v1608 = vadd.f32 %v1607, %v1593
    %v1609 = vrot.slane %v1608, 4
    %v1610 = vadd.f32 %v1608, %v1609
    %v1611 = vrot.slane %v1610, 2
    %v1612 = vadd.f32 %v1610, %v1611
    %v1613 = vrot.slane %v1612, 1
    %v1614 = vadd.f32 %v1612, %v1613
    %vm1615 = vcmp.lt.f32.partialorder %v1614, 14.0
    %v1616 = vsel %vm1615, %v1432, inf
    %v1617 = vsel %vm194, %v1616, inf
    %1618 = vmin.xlane.f32.xlu0 %v1617
    %v1619 = vpop.xlane.xlu0 %1618
    %v1620 = vand.u32 2147483647, %v1619
    %v1621 = vsel %vm1615, 1.0, -1.0
    %v1622 = vsub.f32 %v1432, %v1620
    %v1623 = vmul.f32 %v1621, 0.1
    %v1624 = vadd.f32 %v1622, %v1623
    %v1625 = vxor.u32 %v1624, 2147483648
    %v1626 = vmul.f32 %v1625, 1.442695
    %v1627 = vpow.pop %v1626
    %v1628 = vadd.f32 %v1627, 1.0
    %v1629 = vrcp.pop %v1628
    %v1630 = vmul.f32 %v1628, %v1629
    %v1631 = vsub.f32 1.0, %v1630
    %v1632 = vmul.f32 %v1629, %v1631
    %v1633 = vadd.f32 %v1629, %v1632
    %vm1634 = vweird.f32 %v1628
    %vm1635 = vweird.f32 %v1629
    %vm1636 = vmor %vm1634, %vm1635
    %v1637 = vsel %vm1636, %v1629, %v1633
    %v1638 = vand.u32 2147483647, %v1628
    %vm1639 = vcmp.eq.f32.partialorder %v1638, 8.507059e+37
    %v1640 = vand.u32 %v1628, 2147483648
    %v1641 = vor.u32 1.1754944e-38, %v1640
    %v1642 = vsel %vm1639, %v1641, %v1637
    %v1643 = vmul.f32 1.0, %v1642
    %v1645 = vrot.slane %v1643, 7
    %v1647 = vsel %vm194, %v1432, %v1645
    %s1648 = scalar_lea.vmem [#allocation7], 24
    %v1649 = vld [vmem:[%s1648] sm:$0xff]
    %1650 = vmatpush.msra.mxu0 %v112
    %1651 = vmatpush.msra.mxu0 %v111
    %1652 = vmatpush.msra.mxu0 %v110
    %1653 = vmatpush.msra.mxu0 %v109
    %1654 = vmatpush.msra.mxu0 %v108
    %1655 = vmatpush.msra.mxu0 %v107
    %1656 = vmatpush.msra.mxu0 %v106
    %1657 = vmatpush.msra.mxu0 %v105
    %1658 = vmatpush.msra.mxu0 %v104
    %1659 = vmatpush.msra.mxu0 %v103
    %1660 = vmatpush.msra.mxu0 %v102
    %1661 = vmatpush.msra.mxu0 %v101
    %1662 = vmatpush.msra.mxu0 %v100
    %1663 = vmatpush.msra.mxu0 %v99
    %1664 = vmatpush.msra.mxu0 %v98
    %1665 = vmatpush.msra.mxu0 %v97
    %1666 = vmatmul.f32.gmra.mxu0 %v1647
    %v1667 = vpop.f32.mrf.mxu0
    %v1668 = vadd.f32 0.0, %v1667
    %1669 = vdwg.mxu0
    %1670 = vmatpush.msra.mxu0 %v112
    %1671 = vmatpush.msra.mxu0 %v111
    %1672 = vmatpush.msra.mxu0 %v110
    %1673 = vmatpush.msra.mxu0 %v109
    %1674 = vmatpush.msra.mxu0 %v108
    %1675 = vmatpush.msra.mxu0 %v107
    %1676 = vmatpush.msra.mxu0 %v106
    %1677 = vmatpush.msra.mxu0 %v105
    %1678 = vmatpush.msra.mxu0 %v104
    %1679 = vmatpush.msra.mxu0 %v103
    %1680 = vmatpush.msra.mxu0 %v102
    %1681 = vmatpush.msra.mxu0 %v101
    %1682 = vmatpush.msra.mxu0 %v100
    %1683 = vmatpush.msra.mxu0 %v99
    %1684 = vmatpush.msra.mxu0 %v98
    %1685 = vmatpush.msra.mxu0 %v97
    %1686 = vmatmul.f32.gmra.mxu0 %v1668
    %v1687 = vpop.f32.mrf.mxu0
    %v1688 = vadd.f32 0.0, %v1687
    %1689 = vdwg.mxu0
    %1690 = vmatpush.msra.mxu0 %v112
    %1691 = vmatpush.msra.mxu0 %v111
    %1692 = vmatpush.msra.mxu0 %v110
    %1693 = vmatpush.msra.mxu0 %v109
    %1694 = vmatpush.msra.mxu0 %v108
    %1695 = vmatpush.msra.mxu0 %v107
    %1696 = vmatpush.msra.mxu0 %v106
    %1697 = vmatpush.msra.mxu0 %v105
    %1698 = vmatpush.msra.mxu0 %v104
    %1699 = vmatpush.msra.mxu0 %v103
    %1700 = vmatpush.msra.mxu0 %v102
    %1701 = vmatpush.msra.mxu0 %v101
    %1702 = vmatpush.msra.mxu0 %v100
    %1703 = vmatpush.msra.mxu0 %v99
    %1704 = vmatpush.msra.mxu0 %v98
    %1705 = vmatpush.msra.mxu0 %v97
    %1706 = vmatmul.f32.gmra.mxu0 %v1688
    %v1707 = vpop.f32.mrf.mxu0
    %v1708 = vadd.f32 0.0, %v1707
    %1709 = vdwg.mxu0
    %v1711 = vrot.slane %v1668, 6
    %v1714 = vrot.slane %v1688, 4
    %v1717 = vrot.slane %v1708, 2
    %v1719 = vsel %vm184, %v1647, %v1711
    %v1720 = vsel %vm186, %v1719, %v1714
    %v1721 = vsel %vm188, %v1720, %v1717
    %v1723 = vsel %vm190, %v1649, 0
    %1725 = vmatpush.msra.mxu0 0.0
    %1726 = vmatpush.msra.mxu0 0.0
    %1727 = vmatpush.msra.mxu0 0.0
    %1728 = vmatpush.msra.mxu0 0.0
    %1729 = vmatpush.msra.mxu0 0.0
    %1730 = vmatpush.msra.mxu0 0.0
    %1731 = vmatpush.msra.mxu0 0.0
    %1732 = vmatpush.msra.mxu0 0.0
    %1733 = vmatpush.msra.mxu0 0.0
    %1734 = vmatpush.msra.mxu0 0.0
    %1735 = vmatpush.msra.mxu0 0.0
    %1736 = vmatpush.msra.mxu0 0.0
    %1737 = vmatpush.msra.mxu0 0.0
    %1738 = vmatpush.msra.mxu0 0.0
    %1739 = vmatpush.msra.mxu0 %v196
    %1740 = vmatpush.msra.mxu0 %v1721
    %1741 = vmatmul.f32.gmra.mxu0 %v1723
    %v1742 = vpop.f32.mrf.mxu0
    %v1743 = vadd.f32 0.0, %v1742
    %1744 = vdwg.mxu0
    %v1745 = vmax.f32 %v1743, 0.0
    %s1746 = scalar_lea.vmem [#allocation8], 24
    %v1747 = vld [vmem:[%s1746] sm:$0xff]
    %1748 = vmatpush.msra.mxu0 %v112
    %1749 = vmatpush.msra.mxu0 %v111
    %1750 = vmatpush.msra.mxu0 %v110
    %1751 = vmatpush.msra.mxu0 %v109
    %1752 = vmatpush.msra.mxu0 %v108
    %1753 = vmatpush.msra.mxu0 %v107
    %1754 = vmatpush.msra.mxu0 %v106
    %1755 = vmatpush.msra.mxu0 %v105
    %1756 = vmatpush.msra.mxu0 %v104
    %1757 = vmatpush.msra.mxu0 %v103
    %1758 = vmatpush.msra.mxu0 %v102
    %1759 = vmatpush.msra.mxu0 %v101
    %1760 = vmatpush.msra.mxu0 %v100
    %1761 = vmatpush.msra.mxu0 %v99
    %1762 = vmatpush.msra.mxu0 %v98
    %1763 = vmatpush.msra.mxu0 %v97
    %1764 = vmatmul.f32.gmra.mxu0 %v1745
    %v1765 = vpop.f32.mrf.mxu0
    %v1766 = vadd.f32 0.0, %v1765
    %1767 = vdwg.mxu0
    %1768 = vmatpush.msra.mxu0 %v112
    %1769 = vmatpush.msra.mxu0 %v111
    %1770 = vmatpush.msra.mxu0 %v110
    %1771 = vmatpush.msra.mxu0 %v109
    %1772 = vmatpush.msra.mxu0 %v108
    %1773 = vmatpush.msra.mxu0 %v107
    %1774 = vmatpush.msra.mxu0 %v106
    %1775 = vmatpush.msra.mxu0 %v105
    %1776 = vmatpush.msra.mxu0 %v104
    %1777 = vmatpush.msra.mxu0 %v103
    %1778 = vmatpush.msra.mxu0 %v102
    %1779 = vmatpush.msra.mxu0 %v101
    %1780 = vmatpush.msra.mxu0 %v100
    %1781 = vmatpush.msra.mxu0 %v99
    %1782 = vmatpush.msra.mxu0 %v98
    %1783 = vmatpush.msra.mxu0 %v97
    %1784 = vmatmul.f32.gmra.mxu0 %v1766
    %v1785 = vpop.f32.mrf.mxu0
    %v1786 = vadd.f32 0.0, %v1785
    %1787 = vdwg.mxu0
    %1788 = vmatpush.msra.mxu0 %v112
    %1789 = vmatpush.msra.mxu0 %v111
    %1790 = vmatpush.msra.mxu0 %v110
    %1791 = vmatpush.msra.mxu0 %v109
    %1792 = vmatpush.msra.mxu0 %v108
    %1793 = vmatpush.msra.mxu0 %v107
    %1794 = vmatpush.msra.mxu0 %v106
    %1795 = vmatpush.msra.mxu0 %v105
    %1796 = vmatpush.msra.mxu0 %v104
    %1797 = vmatpush.msra.mxu0 %v103
    %1798 = vmatpush.msra.mxu0 %v102
    %1799 = vmatpush.msra.mxu0 %v101
    %1800 = vmatpush.msra.mxu0 %v100
    %1801 = vmatpush.msra.mxu0 %v99
    %1802 = vmatpush.msra.mxu0 %v98
    %1803 = vmatpush.msra.mxu0 %v97
    %1804 = vmatmul.f32.gmra.mxu0 %v1786
    %v1805 = vpop.f32.mrf.mxu0
    %v1806 = vadd.f32 0.0, %v1805
    %1807 = vdwg.mxu0
    %v1809 = vsel %vm280, %v1747, 0
    %1811 = vmatpush.msra.mxu0 0.0
    %1812 = vmatpush.msra.mxu0 0.0
    %1813 = vmatpush.msra.mxu0 0.0
    %1814 = vmatpush.msra.mxu0 0.0
    %1815 = vmatpush.msra.mxu0 0.0
    %1816 = vmatpush.msra.mxu0 0.0
    %1817 = vmatpush.msra.mxu0 0.0
    %1818 = vmatpush.msra.mxu0 0.0
    %1819 = vmatpush.msra.mxu0 0.0
    %1820 = vmatpush.msra.mxu0 0.0
    %1821 = vmatpush.msra.mxu0 0.0
    %1822 = vmatpush.msra.mxu0 %v196
    %1823 = vmatpush.msra.mxu0 %v1806
    %1824 = vmatpush.msra.mxu0 %v1786
    %1825 = vmatpush.msra.mxu0 %v1766
    %1826 = vmatpush.msra.mxu0 %v1745
    %1827 = vmatmul.f32.gmra.mxu0 %v1809
    %v1828 = vpop.f32.mrf.mxu0
    %v1829 = vadd.f32 0.0, %v1828
    %1830 = vdwg.mxu0
    %v1831 = vmax.f32 %v1829, 0.0
    %s1832 = scalar_lea.vmem [#allocation10], 3
    %v1833 = vld [vmem:[%s1832] sm:$0x1]
    %1834 = vmatpush.msra.mxu0 %v112
    %1835 = vmatpush.msra.mxu0 %v111
    %1836 = vmatpush.msra.mxu0 %v110
    %1837 = vmatpush.msra.mxu0 %v109
    %1838 = vmatpush.msra.mxu0 %v108
    %1839 = vmatpush.msra.mxu0 %v107
    %1840 = vmatpush.msra.mxu0 %v106
    %1841 = vmatpush.msra.mxu0 %v105
    %1842 = vmatpush.msra.mxu0 %v104
    %1843 = vmatpush.msra.mxu0 %v103
    %1844 = vmatpush.msra.mxu0 %v102
    %1845 = vmatpush.msra.mxu0 %v101
    %1846 = vmatpush.msra.mxu0 %v100
    %1847 = vmatpush.msra.mxu0 %v99
    %1848 = vmatpush.msra.mxu0 %v98
    %1849 = vmatpush.msra.mxu0 %v97
    %1850 = vmatmul.f32.gmra.mxu0 %v1831
    %v1851 = vpop.f32.mrf.mxu0
    %v1852 = vadd.f32 0.0, %v1851
    %1853 = vdwg.mxu0
    %1854 = vmatpush.msra.mxu0 %v112
    %1855 = vmatpush.msra.mxu0 %v111
    %1856 = vmatpush.msra.mxu0 %v110
    %1857 = vmatpush.msra.mxu0 %v109
    %1858 = vmatpush.msra.mxu0 %v108
    %1859 = vmatpush.msra.mxu0 %v107
    %1860 = vmatpush.msra.mxu0 %v106
    %1861 = vmatpush.msra.mxu0 %v105
    %1862 = vmatpush.msra.mxu0 %v104
    %1863 = vmatpush.msra.mxu0 %v103
    %1864 = vmatpush.msra.mxu0 %v102
    %1865 = vmatpush.msra.mxu0 %v101
    %1866 = vmatpush.msra.mxu0 %v100
    %1867 = vmatpush.msra.mxu0 %v99
    %1868 = vmatpush.msra.mxu0 %v98
    %1869 = vmatpush.msra.mxu0 %v97
    %1870 = vmatmul.f32.gmra.mxu0 %v1852
    %v1871 = vpop.f32.mrf.mxu0
    %v1872 = vadd.f32 0.0, %v1871
    %1873 = vdwg.mxu0
    %1874 = vmatpush.msra.mxu0 %v112
    %1875 = vmatpush.msra.mxu0 %v111
    %1876 = vmatpush.msra.mxu0 %v110
    %1877 = vmatpush.msra.mxu0 %v109
    %1878 = vmatpush.msra.mxu0 %v108
    %1879 = vmatpush.msra.mxu0 %v107
    %1880 = vmatpush.msra.mxu0 %v106
    %1881 = vmatpush.msra.mxu0 %v105
    %1882 = vmatpush.msra.mxu0 %v104
    %1883 = vmatpush.msra.mxu0 %v103
    %1884 = vmatpush.msra.mxu0 %v102
    %1885 = vmatpush.msra.mxu0 %v101
    %1886 = vmatpush.msra.mxu0 %v100
    %1887 = vmatpush.msra.mxu0 %v99
    %1888 = vmatpush.msra.mxu0 %v98
    %1889 = vmatpush.msra.mxu0 %v97
    %1890 = vmatmul.f32.gmra.mxu0 %v1872
    %v1891 = vpop.f32.mrf.mxu0
    %v1892 = vadd.f32 0.0, %v1891
    %1893 = vdwg.mxu0
    %v1895 = vsel %vm280, %v1833, 0
    %1897 = vmatpush.msra.mxu0 0.0
    %1898 = vmatpush.msra.mxu0 0.0
    %1899 = vmatpush.msra.mxu0 0.0
    %1900 = vmatpush.msra.mxu0 0.0
    %1901 = vmatpush.msra.mxu0 0.0
    %1902 = vmatpush.msra.mxu0 0.0
    %1903 = vmatpush.msra.mxu0 0.0
    %1904 = vmatpush.msra.mxu0 0.0
    %1905 = vmatpush.msra.mxu0 0.0
    %1906 = vmatpush.msra.mxu0 0.0
    %1907 = vmatpush.msra.mxu0 0.0
    %1908 = vmatpush.msra.mxu0 %v196
    %1909 = vmatpush.msra.mxu0 %v1892
    %1910 = vmatpush.msra.mxu0 %v1872
    %1911 = vmatpush.msra.mxu0 %v1852
    %1912 = vmatpush.msra.mxu0 %v1831
    %1913 = vmatmul.f32.gmra.mxu0 %v1895
    %v1914 = vpop.f32.mrf.mxu0
    %v1915 = vadd.f32 0.0, %v1914
    %1916 = vdwg.mxu0
    %v1917 = vmax.f32 %v1915, 0.0
    %v1918 = vsel %vm194, %v1917, 0.0
    %1919 = vadd.xlane.f32.xlu0 %v1918
    %v1920 = vpop.xlane.xlu0 %1919
    %v1921 = vmul.f32 %v1920, %v399
    %v1922 = vsub.f32 %v1917, %v1921
    %v1923 = vmul.f32 %v1922, %v1922
    %v1924 = vsel %vm194, %v1923, 0.0
    %1925 = vadd.xlane.f32.xlu0 %v1924
    %v1926 = vpop.xlane.xlu0 %1925
    %v1927 = vmul.f32 %v1926, %v399
    %v1928 = vadd.f32 %v1927, 1e-05
    %v1929 = vrsqrt.pop %v1928
    %v1930 = vmul.f32 %v1929, %v1928
    %v1931 = vmul.f32 %v1930, %v1929
    %v1932 = vmul.f32 0.5, %v1931
    %v1933 = vsub.f32 1.5, %v1932
    %v1934 = vmul.f32 %v1929, %v1933
    %vm1935 = vweird.f32 %v1928
    %vm1936 = vweird.f32 %v1929
    %vm1937 = vmor %vm1935, %vm1936
    %v1938 = vsel %vm1937, %v1929, %v1934
    %v1939 = vmul.f32 %v1922, %v1938
    %1940 = vxpose.xlu0.b32.start [1/16] %v1939, 128
    %1941 = vxpose.xlu0.b32.cont [2/16] 0.0, 128
    %1942 = vxpose.xlu0.b32.cont [3/16] 0.0, 128
    %1943 = vxpose.xlu0.b32.cont [4/16] 0.0, 128
    %1944 = vxpose.xlu0.b32.cont [5/16] 0.0, 128
    %1945 = vxpose.xlu0.b32.cont [6/16] 0.0, 128
    %1946 = vxpose.xlu0.b32.cont [7/16] 0.0, 128
    %1947 = vxpose.xlu0.b32.cont [8/16] 0.0, 128
    %1948 = vxpose.xlu0.b32.cont [9/16] 0.0, 128
    %1949 = vxpose.xlu0.b32.cont [10/16] 0.0, 128
    %1950 = vxpose.xlu0.b32.cont [11/16] 0.0, 128
    %1951 = vxpose.xlu0.b32.cont [12/16] 0.0, 128
    %1952 = vxpose.xlu0.b32.cont [13/16] 0.0, 128
    %1953 = vxpose.xlu0.b32.cont [14/16] 0.0, 128
    %1954 = vxpose.xlu0.b32.cont [15/16] 0.0, 128
    %1955 = vxpose.xlu0.b32.end [16/16] 0.0, 128
    %v1956 = vpop.trf.xlu0
    %v1957 = vpop.trf.xlu0
    %v1958 = vpop.trf.xlu0
    %v1959 = vpop.trf.xlu0
    %v1960 = vpop.trf.xlu0
    %v1961 = vpop.trf.xlu0
    %v1962 = vpop.trf.xlu0
    %v1963 = vpop.trf.xlu0
    %v1964 = vpop.trf.xlu0
    %v1965 = vpop.trf.xlu0
    %v1966 = vpop.trf.xlu0
    %v1967 = vpop.trf.xlu0
    %v1968 = vpop.trf.xlu0
    %v1969 = vpop.trf.xlu0
    %v1970 = vpop.trf.xlu0
    %v1971 = vpop.trf.xlu0
    %1973 = vset.pattern.permute.xlu0 0
    %1974 = vperm.xlu0 %1973, %v1956
    %v1975 = vpop.permute.xlu0 %1974
    %1978 = vset.pattern.permute.xlu0 0
    %1979 = vperm.xlu0 %1978, %v1957
    %v1980 = vpop.permute.xlu0 %1979
    %1983 = vset.pattern.permute.xlu0 0
    %1984 = vperm.xlu0 %1983, %v1958
    %v1985 = vpop.permute.xlu0 %1984
    %1988 = vset.pattern.permute.xlu0 0
    %1989 = vperm.xlu0 %1988, %v1959
    %v1990 = vpop.permute.xlu0 %1989
    %1993 = vset.pattern.permute.xlu0 0
    %1994 = vperm.xlu0 %1993, %v1960
    %v1995 = vpop.permute.xlu0 %1994
    %1998 = vset.pattern.permute.xlu0 0
    %1999 = vperm.xlu0 %1998, %v1961
    %v2000 = vpop.permute.xlu0 %1999
    %2003 = vset.pattern.permute.xlu0 0
    %2004 = vperm.xlu0 %2003, %v1962
    %v2005 = vpop.permute.xlu0 %2004
    %2008 = vset.pattern.permute.xlu0 0
    %2009 = vperm.xlu0 %2008, %v1963
    %v2010 = vpop.permute.xlu0 %2009
    %2013 = vset.pattern.permute.xlu0 0
    %2014 = vperm.xlu0 %2013, %v1964
    %v2015 = vpop.permute.xlu0 %2014
    %2018 = vset.pattern.permute.xlu0 0
    %2019 = vperm.xlu0 %2018, %v1965
    %v2020 = vpop.permute.xlu0 %2019
    %2023 = vset.pattern.permute.xlu0 0
    %2024 = vperm.xlu0 %2023, %v1966
    %v2025 = vpop.permute.xlu0 %2024
    %2028 = vset.pattern.permute.xlu0 0
    %2029 = vperm.xlu0 %2028, %v1967
    %v2030 = vpop.permute.xlu0 %2029
    %2033 = vset.pattern.permute.xlu0 0
    %2034 = vperm.xlu0 %2033, %v1968
    %v2035 = vpop.permute.xlu0 %2034
    %2038 = vset.pattern.permute.xlu0 0
    %2039 = vperm.xlu0 %2038, %v1969
    %v2040 = vpop.permute.xlu0 %2039
    %2043 = vset.pattern.permute.xlu0 0
    %2044 = vperm.xlu0 %2043, %v1970
    %v2045 = vpop.permute.xlu0 %2044
    %2048 = vset.pattern.permute.xlu0 0
    %2049 = vperm.xlu0 %2048, %v1971
    %v2050 = vpop.permute.xlu0 %2049
    %v2052 = vperm.slane %v1939, 0
    %vm2053 = vcmp.gt.f32.partialorder %v1975, %v2052
    %vm2054 = vcmp.gt.f32.partialorder %v1980, %v2052
    %vm2055 = vcmp.gt.f32.partialorder %v1985, %v2052
    %vm2056 = vcmp.gt.f32.partialorder %v1990, %v2052
    %vm2057 = vcmp.gt.f32.partialorder %v1995, %v2052
    %vm2058 = vcmp.gt.f32.partialorder %v2000, %v2052
    %vm2059 = vcmp.gt.f32.partialorder %v2005, %v2052
    %vm2060 = vcmp.gt.f32.partialorder %v2010, %v2052
    %vm2061 = vcmp.gt.f32.partialorder %v2015, %v2052
    %vm2062 = vcmp.gt.f32.partialorder %v2020, %v2052
    %vm2063 = vcmp.gt.f32.partialorder %v2025, %v2052
    %vm2064 = vcmp.gt.f32.partialorder %v2030, %v2052
    %vm2065 = vcmp.gt.f32.partialorder %v2035, %v2052
    %vm2066 = vcmp.gt.f32.partialorder %v2040, %v2052
    %vm2067 = vcmp.gt.f32.partialorder %v2045, %v2052
    %vm2068 = vcmp.gt.f32.partialorder %v2050, %v2052
    %v2069 = vsel %vm2053, 1, 0
    %v2070 = vsel %vm2054, 1, 0
    %v2071 = vsel %vm2055, 1, 0
    %v2072 = vsel %vm2056, 1, 0
    %v2073 = vsel %vm2057, 1, 0
    %v2074 = vsel %vm2058, 1, 0
    %v2075 = vsel %vm2059, 1, 0
    %v2076 = vsel %vm2060, 1, 0
    %v2077 = vsel %vm2061, 1, 0
    %v2078 = vsel %vm2062, 1, 0
    %v2079 = vsel %vm2063, 1, 0
    %v2080 = vsel %vm2064, 1, 0
    %v2081 = vsel %vm2065, 1, 0
    %v2082 = vsel %vm2066, 1, 0
    %v2083 = vsel %vm2067, 1, 0
    %v2084 = vsel %vm2068, 1, 0
    %v2085 = vcvt.s32.f32 %v2069
    %v2086 = vcvt.s32.f32 %v2070
    %v2087 = vcvt.s32.f32 %v2071
    %v2088 = vcvt.s32.f32 %v2072
    %v2089 = vcvt.s32.f32 %v2073
    %v2090 = vcvt.s32.f32 %v2074
    %v2091 = vcvt.s32.f32 %v2075
    %v2092 = vcvt.s32.f32 %v2076
    %v2093 = vcvt.s32.f32 %v2077
    %v2094 = vcvt.s32.f32 %v2078
    %v2095 = vcvt.s32.f32 %v2079
    %v2096 = vcvt.s32.f32 %v2080
    %v2097 = vcvt.s32.f32 %v2081
    %v2098 = vcvt.s32.f32 %v2082
    %v2099 = vcvt.s32.f32 %v2083
    %v2100 = vcvt.s32.f32 %v2084
    %v2101 = vadd.f32 %v2085, %v2086
    %v2102 = vadd.f32 %v2101, %v2087
    %v2103 = vadd.f32 %v2102, %v2088
    %v2104 = vadd.f32 %v2103, %v2089
    %v2105 = vadd.f32 %v2104, %v2090
    %v2106 = vadd.f32 %v2105, %v2091
    %v2107 = vadd.f32 %v2106, %v2092
    %v2108 = vadd.f32 %v2107, %v2093
    %v2109 = vadd.f32 %v2108, %v2094
    %v2110 = vadd.f32 %v2109, %v2095
    %v2111 = vadd.f32 %v2110, %v2096
    %v2112 = vadd.f32 %v2111, %v2097
    %v2113 = vadd.f32 %v2112, %v2098
    %v2114 = vadd.f32 %v2113, %v2099
    %v2115 = vadd.f32 %v2114, %v2100
    %v2116 = vrot.slane %v2115, 4
    %v2117 = vadd.f32 %v2115, %v2116
    %v2118 = vrot.slane %v2117, 2
    %v2119 = vadd.f32 %v2117, %v2118
    %v2120 = vrot.slane %v2119, 1
    %v2121 = vadd.f32 %v2119, %v2120
    %vm2122 = vcmp.lt.f32.partialorder %v2121, 14.0
    %v2123 = vsel %vm2122, %v1939, inf
    %v2124 = vsel %vm194, %v2123, inf
    %2125 = vmin.xlane.f32.xlu0 %v2124
    %v2126 = vpop.xlane.xlu0 %2125
    %v2127 = vand.u32 2147483647, %v2126
    %v2128 = vsel %vm2122, 1.0, -1.0
    %v2129 = vsub.f32 %v1939, %v2127
    %v2130 = vmul.f32 %v2128, 0.1
    %v2131 = vadd.f32 %v2129, %v2130
    %v2132 = vxor.u32 %v2131, 2147483648
    %v2133 = vmul.f32 %v2132, 1.442695
    %v2134 = vpow.pop %v2133
    %v2135 = vadd.f32 %v2134, 1.0
    %v2136 = vrcp.pop %v2135
    %v2137 = vmul.f32 %v2135, %v2136
    %v2138 = vsub.f32 1.0, %v2137
    %v2139 = vmul.f32 %v2136, %v2138
    %v2140 = vadd.f32 %v2136, %v2139
    %vm2141 = vweird.f32 %v2135
    %vm2142 = vweird.f32 %v2136
    %vm2143 = vmor %vm2141, %vm2142
    %v2144 = vsel %vm2143, %v2136, %v2140
    %v2145 = vand.u32 2147483647, %v2135
    %vm2146 = vcmp.eq.f32.partialorder %v2145, 8.507059e+37
    %v2147 = vand.u32 %v2135, 2147483648
    %v2148 = vor.u32 1.1754944e-38, %v2147
    %v2149 = vsel %vm2146, %v2148, %v2144
    %v2150 = vmul.f32 1.0, %v2149
    %2151 = vst [vmem:[#allocation11] sm:$0x1] %v2150
    // Predicated region
    $region42: #{tpu_custom_call.1} parent=1 // pred_check
      _
    $region43: #{tpu_custom_call.1} parent=1 // pred_check_branch
      %2153 = sbr.rel (0) target = $region45
    $region44: #{tpu_custom_call.1} parent=1 // pred_region
      %2155 = vsyncadd [#allocation4], 0
      %s2157 = sshll.u32 [#allocation11], 4
      %s2158 = int_to_ptr.vmem [resolvable:$true] %s2157
      %s2159 = sshll.u32 %s5, 4
      %s2160 = int_to_ptr.hbm [resolvable:$true] %s2159
      %2162 = dma.vmem_to_hbm [thread:$0]  %s2158, 16, %s2160, [#allocation4]
    $region45: #{tpu_custom_call.1} parent=1 // pred_fallthru
      _
    // Predicated region
    $region46: #{tpu_custom_call.1} parent=1 // pred_check
      _
    $region47: #{tpu_custom_call.1} parent=1 // pred_check_branch
      %2164 = sbr.rel (0) target = $region49
    $region48: #{tpu_custom_call.1} parent=1 // pred_region
      %2166 = dma.done [#allocation4], 16
    $region49: #{tpu_custom_call.1} parent=1 // pred_fallthru
      _
    %2167 = vsyncpa [#allocation3], 1
    %2168 = vsyncpa [#allocation6], 1
    %2169 = vsyncpa [#allocation9], 1
    %2170 = vsyncpa [#allocation4], 1

</llo_original>
